<compile_context>
chip_gen: v7x
topology: tpu7x:2x2x1
jax: 0.10.0
libtpu: 0.0.40
codegen_flags: <defaults>
</compile_context>

<pallas_src>
import functools

import jax
import jax.numpy as jnp
import numpy as np
from jax.experimental import pallas as pl
from jax.experimental.pallas import tpu as pltpu

EPS = 1e-5  # PyTorch InstanceNorm2d default


def _residual_block_kernel(x_ref, w1_ref, w2_ref, wr_ref, br_ref, mask_ref,
                           alpha_ref, out_ref, *, H, W, Cout):
    HW = H * W
    x = x_ref[0]  # (Cin, HW) f32

    def conv3x3(a, w_taps_ref, cout):
        """3x3 'same' conv as 9 per-tap MXU pushes: sum_t W_t @ (roll(a) * mask_t)."""
        acc = jnp.zeros((cout, HW), jnp.float32)
        for t in range(9):
            oy, ox = t // 3 - 1, t % 3 - 1
            off = oy * W + ox
            shift = (-off) % HW                     # rolled[p] = a[(p + off) % HW]
            rolled = a if shift == 0 else pltpu.roll(a, shift=shift, axis=1)
            xt = rolled * mask_ref[pl.ds(t, 1), :]  # zero the wrapped halo
            acc = acc + jnp.dot(w_taps_ref[t], xt.astype(jnp.bfloat16),
                                preferred_element_type=jnp.float32)
        return acc

    def inorm_prelu(z, alpha):
        # InstanceNorm2d (biased variance, no affine) + PReLU, per channel over lanes.
        mean = jnp.mean(z, axis=-1, keepdims=True)
        var = jnp.mean((z - mean) ** 2, axis=-1, keepdims=True)
        y = (z - mean) * jax.lax.rsqrt(var + EPS)
        return jnp.where(y >= 0, y, alpha * y)

    # ---- residual 1x1 conv (the only bias that survives InstanceNorm) ----
    res = jnp.dot(wr_ref[...], x.astype(jnp.bfloat16),
                  preferred_element_type=jnp.float32) + br_ref[...]

    # ---- conv subunit 0 ----
    y1 = inorm_prelu(conv3x3(x, w1_ref, Cout), alpha_ref[0])

    # ---- conv subunit 1 ----
    y2 = inorm_prelu(conv3x3(y1, w2_ref, Cout), alpha_ref[1])

    out_ref[0] = (y2 + res).astype(out_ref.dtype)   # lane-dense store (HW last)


def residual_block(x_nchw, params):
    """x_nchw: (N, Cin, H, W) float32  ->  (N, Cout, H, W) float32."""
    w1, b1, w2, b2, wr, br, alphas = params
    del b1, b2  # cancelled exactly by InstanceNorm's per-channel mean subtraction
    N, Cin, H, W = x_nchw.shape
    Cout = w1.shape[-1]
    HW = H * W

    x_flat = x_nchw.reshape(N, Cin, HW).astype(jnp.float32)

    # Per-tap weight matrices, bf16 for the MXU (tap order t = ky*3 + kx).
    w1_taps = jnp.transpose(w1.reshape(9, Cin, Cout), (0, 2, 1)).astype(jnp.bfloat16)   # (9, Cout, Cin)
    w2_taps = jnp.transpose(w2.reshape(9, Cout, Cout), (0, 2, 1)).astype(jnp.bfloat16)  # (9, Cout, Cout)
    wr_mat = wr.T.astype(jnp.bfloat16)                                                  # (Cout, Cin)
    br_col = br.reshape(Cout, 1).astype(jnp.float32)

    # Precompute the 9 'same'-padding validity masks once (lane p -> pixel (p//W, p%W)).
    hh, ww = np.arange(HW) // W, np.arange(HW) % W
    masks = np.stack([((hh + t // 3 - 1 >= 0) & (hh + t // 3 - 1 < H) &
                       (ww + t % 3 - 1 >= 0) & (ww + t % 3 - 1 < W))
                      for t in range(9)]).astype(np.float32)
    masks = jnp.asarray(masks)                                                          # (9, HW)

    kernel = functools.partial(_residual_block_kernel, H=H, W=W, Cout=Cout)

    out_flat = pl.pallas_call(
        kernel,
        out_shape=jax.ShapeDtypeStruct((N, Cout, HW), jnp.float32),
        grid_spec=pltpu.PrefetchScalarGridSpec(
            num_scalar_prefetch=0,
            grid=(N,),
            in_specs=[
                pl.BlockSpec((1, Cin, HW), lambda n: (n, 0, 0)),       # x
                pl.BlockSpec((9, Cout, Cin), lambda n: (0, 0, 0)),     # conv1 taps
                pl.BlockSpec((9, Cout, Cout), lambda n: (0, 0, 0)),    # conv2 taps
                pl.BlockSpec((Cout, Cin), lambda n: (0, 0)),           # residual 1x1
                pl.BlockSpec((Cout, 1), lambda n: (0, 0)),             # residual bias
                pl.BlockSpec((9, HW), lambda n: (0, 0)),               # halo masks
                pl.BlockSpec(memory_space=pltpu.MemorySpace.SMEM),     # PReLU alphas
            ],
            out_specs=pl.BlockSpec((1, Cout, HW), lambda n: (n, 0, 0)),
        ),
        compiler_params=pltpu.CompilerParams(dimension_semantics=("parallel",)),
    )(x_flat, w1_taps, w2_taps, wr_mat, br_col, masks, alphas)

    return out_flat.reshape(N, Cout, H, W)


def reference_forward(x_nchw, params):
    """Pure-JAX reference matching the PyTorch ResidualBlock forward (NCHW)."""
    w1, b1, w2, b2, wr, br, alphas = params
    Cin = x_nchw.shape[1]
    Cout = w1.shape[-1]
    prec = jax.lax.Precision.HIGHEST

    def conv(x, w_hwio, b, k):
        w_oihw = jnp.transpose(w_hwio, (3, 2, 0, 1))
        pad = (k - 1) // 2
        y = jax.lax.conv_general_dilated(
            x, w_oihw, (1, 1), [(pad, pad), (pad, pad)],
            dimension_numbers=("NCHW", "OIHW", "NCHW"), precision=prec)
        return y + b.reshape(1, -1, 1, 1)

    def inorm(x):
        m = jnp.mean(x, axis=(2, 3), keepdims=True)
        v = jnp.mean((x - m) ** 2, axis=(2, 3), keepdims=True)
        return (x - m) / jnp.sqrt(v + EPS)

    def prelu(x, a):
        return jnp.where(x >= 0, x, a * x)

    h = prelu(inorm(conv(x_nchw, w1, b1, 3)), alphas[0])
    h = prelu(inorm(conv(h, w2, b2, 3)), alphas[1])
    res = conv(x_nchw, wr.reshape(1, 1, Cin, Cout), br, 1)
    return h + res


if __name__ == "__main__":
    N, Cin, Cout, H, W = 2, 4, 8, 16, 16

    key = jax.random.PRNGKey(0)
    ks = jax.random.split(key, 7)
    w1 = jax.random.normal(ks[0], (3, 3, Cin, Cout), jnp.float32) * 0.2
    b1 = jax.random.normal(ks[1], (Cout,), jnp.float32) * 0.1
    w2 = jax.random.normal(ks[2], (3, 3, Cout, Cout), jnp.float32) * 0.2
    b2 = jax.random.normal(ks[3], (Cout,), jnp.float32) * 0.1
    wr = jax.random.normal(ks[4], (Cin, Cout), jnp.float32) * 0.2
    br = jax.random.normal(ks[5], (Cout,), jnp.float32) * 0.1
    alphas = jnp.array([0.25, 0.25], jnp.float32)  # nn.PReLU() default init
    params = (w1, b1, w2, b2, wr, br, alphas)

    x = jax.random.normal(ks[6], (N, Cin, H, W), jnp.float32)

    out = residual_block(x, params)
    out = jax.block_until_ready(out)

    ref = reference_forward(x, params)
    assert out.shape == (N, Cout, H, W)
    # bf16 MXU operands (f32 accumulate / f32 InstanceNorm) -> slightly looser tol.
    np.testing.assert_allclose(np.asarray(out), np.asarray(ref), atol=3e-2, rtol=3e-2)
    print("KERNEL_OK")
</pallas_src>

<mosaic_0001>
module attributes {stable_mosaic.version = 11 : i64} {
  func.func @_residual_block_kernel(%arg0: i32, %arg1: memref<1x4x256xf32, #tpu.memory_space<vmem>>, %arg2: memref<9x8x4xbf16, #tpu.memory_space<vmem>>, %arg3: memref<9x8x8xbf16, #tpu.memory_space<vmem>>, %arg4: memref<8x4xbf16, #tpu.memory_space<vmem>>, %arg5: memref<8x1xf32, #tpu.memory_space<vmem>>, %arg6: memref<9x256xf32, #tpu.memory_space<vmem>>, %arg7: memref<2xf32, #tpu.memory_space<smem>>, %arg8: memref<1x8x256xf32, #tpu.memory_space<vmem>>) attributes {dimension_semantics = [#tpu.dimension_semantics<parallel>], iteration_bounds = array<i64: 2>, scalar_prefetch = 0 : i64, scratch_operands = 0 : i64, tpu.core_type = #tpu.core_type<tc>, window_params = [{transform_indices = @transform_0, window_bounds = array<i64: 1, 4, 256>}, {pipeline_mode = #tpu.pipeline_mode<synchronous>, transform_indices = @transform_1, window_bounds = array<i64: 9, 8, 4>}, {pipeline_mode = #tpu.pipeline_mode<synchronous>, transform_indices = @transform_2, window_bounds = array<i64: 9, 8, 8>}, {pipeline_mode = #tpu.pipeline_mode<synchronous>, transform_indices = @transform_3, window_bounds = array<i64: 8, 4>}, {pipeline_mode = #tpu.pipeline_mode<synchronous>, transform_indices = @transform_4, window_bounds = array<i64: 8, 1>}, {pipeline_mode = #tpu.pipeline_mode<synchronous>, transform_indices = @transform_5, window_bounds = array<i64: 9, 256>}, {transform_indices = @transform_6, window_bounds = array<i64: 2>}, {transform_indices = @transform_7, window_bounds = array<i64: 1, 8, 256>}]} {
    %c0 = arith.constant 0 : index
    %c0_0 = arith.constant 0 : index
    %c0_1 = arith.constant 0 : index
    %0 = vector.load %arg1[%c0, %c0_0, %c0_1] : memref<1x4x256xf32, #tpu.memory_space<vmem>>, vector<1x4x256xf32>
    %1 = vector.shape_cast %0 : vector<1x4x256xf32> to vector<4x256xf32>
    %c0_2 = arith.constant 0 : index
    %c0_3 = arith.constant 0 : index
    %2 = vector.load %arg4[%c0_2, %c0_3] : memref<8x4xbf16, #tpu.memory_space<vmem>>, vector<8x4xbf16>
    %3 = arith.truncf %1 : vector<4x256xf32> to vector<4x256xbf16>
    %cst = arith.constant dense<0.000000e+00> : vector<8x256xf32>
    %4 = tpu.matmul %2, %3, %cst {dimension_numbers = #tpu.dot_dimension_numbers<[1], [0], [0], [1], [0, 0, 1, 1], [], []>} : vector<8x4xbf16>, vector<4x256xbf16>, vector<8x256xf32> -> vector<8x256xf32>
    %c0_4 = arith.constant 0 : index
    %c0_5 = arith.constant 0 : index
    %5 = vector.load %arg5[%c0_4, %c0_5] : memref<8x1xf32, #tpu.memory_space<vmem>>, vector<8x1xf32>
    %6 = vector.broadcast %5 : vector<8x1xf32> to vector<8x256xf32>
    %7 = arith.addf %4, %6 : vector<8x256xf32>
    %cst_6 = arith.constant 0.000000e+00 : f32
    %8 = vector.broadcast %cst_6 : f32 to vector<8x256xf32>
    %c17_i32 = arith.constant 17 : i32
    %9 = tpu.dynamic_rotate %1 by %c17_i32 dim 1 : vector<4x256xf32>, i32 -> vector<4x256xf32>
    %c0_7 = arith.constant 0 : index
    %c0_8 = arith.constant 0 : index
    %10 = vector.load %arg6[%c0_7, %c0_8] : memref<9x256xf32, #tpu.memory_space<vmem>>, vector<1x256xf32>
    %11 = vector.broadcast %10 : vector<1x256xf32> to vector<4x256xf32>
    %12 = arith.mulf %9, %11 : vector<4x256xf32>
    %c0_9 = arith.constant 0 : index
    %c0_10 = arith.constant 0 : index
    %c0_11 = arith.constant 0 : index
    %13 = vector.load %arg2[%c0_9, %c0_10, %c0_11] : memref<9x8x4xbf16, #tpu.memory_space<vmem>>, vector<1x8x4xbf16>
    %14 = vector.shape_cast %13 : vector<1x8x4xbf16> to vector<8x4xbf16>
    %15 = arith.truncf %12 : vector<4x256xf32> to vector<4x256xbf16>
    %cst_12 = arith.constant dense<0.000000e+00> : vector<8x256xf32>
    %16 = tpu.matmul %14, %15, %cst_12 {dimension_numbers = #tpu.dot_dimension_numbers<[1], [0], [0], [1], [0, 0, 1, 1], [], []>} : vector<8x4xbf16>, vector<4x256xbf16>, vector<8x256xf32> -> vector<8x256xf32>
    %17 = arith.addf %8, %16 : vector<8x256xf32>
    %c16_i32 = arith.constant 16 : i32
    %18 = tpu.dynamic_rotate %1 by %c16_i32 dim 1 : vector<4x256xf32>, i32 -> vector<4x256xf32>
    %c1 = arith.constant 1 : index
    %c0_13 = arith.constant 0 : index
    %19 = vector.load %arg6[%c1, %c0_13] : memref<9x256xf32, #tpu.memory_space<vmem>>, vector<1x256xf32>
    %20 = vector.broadcast %19 : vector<1x256xf32> to vector<4x256xf32>
    %21 = arith.mulf %18, %20 : vector<4x256xf32>
    %c1_14 = arith.constant 1 : index
    %c0_15 = arith.constant 0 : index
    %c0_16 = arith.constant 0 : index
    %22 = vector.load %arg2[%c1_14, %c0_15, %c0_16] : memref<9x8x4xbf16, #tpu.memory_space<vmem>>, vector<1x8x4xbf16>
    %23 = vector.shape_cast %22 : vector<1x8x4xbf16> to vector<8x4xbf16>
    %24 = arith.truncf %21 : vector<4x256xf32> to vector<4x256xbf16>
    %cst_17 = arith.constant dense<0.000000e+00> : vector<8x256xf32>
    %25 = tpu.matmul %23, %24, %cst_17 {dimension_numbers = #tpu.dot_dimension_numbers<[1], [0], [0], [1], [0, 0, 1, 1], [], []>} : vector<8x4xbf16>, vector<4x256xbf16>, vector<8x256xf32> -> vector<8x256xf32>
    %26 = arith.addf %17, %25 : vector<8x256xf32>
    %c15_i32 = arith.constant 15 : i32
    %27 = tpu.dynamic_rotate %1 by %c15_i32 dim 1 : vector<4x256xf32>, i32 -> vector<4x256xf32>
    %c2 = arith.constant 2 : index
    %c0_18 = arith.constant 0 : index
    %28 = vector.load %arg6[%c2, %c0_18] : memref<9x256xf32, #tpu.memory_space<vmem>>, vector<1x256xf32>
    %29 = vector.broadcast %28 : vector<1x256xf32> to vector<4x256xf32>
    %30 = arith.mulf %27, %29 : vector<4x256xf32>
    %c2_19 = arith.constant 2 : index
    %c0_20 = arith.constant 0 : index
    %c0_21 = arith.constant 0 : index
    %31 = vector.load %arg2[%c2_19, %c0_20, %c0_21] : memref<9x8x4xbf16, #tpu.memory_space<vmem>>, vector<1x8x4xbf16>
    %32 = vector.shape_cast %31 : vector<1x8x4xbf16> to vector<8x4xbf16>
    %33 = arith.truncf %30 : vector<4x256xf32> to vector<4x256xbf16>
    %cst_22 = arith.constant dense<0.000000e+00> : vector<8x256xf32>
    %34 = tpu.matmul %32, %33, %cst_22 {dimension_numbers = #tpu.dot_dimension_numbers<[1], [0], [0], [1], [0, 0, 1, 1], [], []>} : vector<8x4xbf16>, vector<4x256xbf16>, vector<8x256xf32> -> vector<8x256xf32>
    %35 = arith.addf %26, %34 : vector<8x256xf32>
    %c1_i32 = arith.constant 1 : i32
    %36 = tpu.dynamic_rotate %1 by %c1_i32 dim 1 : vector<4x256xf32>, i32 -> vector<4x256xf32>
    %c3 = arith.constant 3 : index
    %c0_23 = arith.constant 0 : index
    %37 = vector.load %arg6[%c3, %c0_23] : memref<9x256xf32, #tpu.memory_space<vmem>>, vector<1x256xf32>
    %38 = vector.broadcast %37 : vector<1x256xf32> to vector<4x256xf32>
    %39 = arith.mulf %36, %38 : vector<4x256xf32>
    %c3_24 = arith.constant 3 : index
    %c0_25 = arith.constant 0 : index
    %c0_26 = arith.constant 0 : index
    %40 = vector.load %arg2[%c3_24, %c0_25, %c0_26] : memref<9x8x4xbf16, #tpu.memory_space<vmem>>, vector<1x8x4xbf16>
    %41 = vector.shape_cast %40 : vector<1x8x4xbf16> to vector<8x4xbf16>
    %42 = arith.truncf %39 : vector<4x256xf32> to vector<4x256xbf16>
    %cst_27 = arith.constant dense<0.000000e+00> : vector<8x256xf32>
    %43 = tpu.matmul %41, %42, %cst_27 {dimension_numbers = #tpu.dot_dimension_numbers<[1], [0], [0], [1], [0, 0, 1, 1], [], []>} : vector<8x4xbf16>, vector<4x256xbf16>, vector<8x256xf32> -> vector<8x256xf32>
    %44 = arith.addf %35, %43 : vector<8x256xf32>
    %c4 = arith.constant 4 : index
    %c0_28 = arith.constant 0 : index
    %45 = vector.load %arg6[%c4, %c0_28] : memref<9x256xf32, #tpu.memory_space<vmem>>, vector<1x256xf32>
    %46 = vector.broadcast %45 : vector<1x256xf32> to vector<4x256xf32>
    %47 = arith.mulf %1, %46 : vector<4x256xf32>
    %c4_29 = arith.constant 4 : index
    %c0_30 = arith.constant 0 : index
    %c0_31 = arith.constant 0 : index
    %48 = vector.load %arg2[%c4_29, %c0_30, %c0_31] : memref<9x8x4xbf16, #tpu.memory_space<vmem>>, vector<1x8x4xbf16>
    %49 = vector.shape_cast %48 : vector<1x8x4xbf16> to vector<8x4xbf16>
    %50 = arith.truncf %47 : vector<4x256xf32> to vector<4x256xbf16>
    %cst_32 = arith.constant dense<0.000000e+00> : vector<8x256xf32>
    %51 = tpu.matmul %49, %50, %cst_32 {dimension_numbers = #tpu.dot_dimension_numbers<[1], [0], [0], [1], [0, 0, 1, 1], [], []>} : vector<8x4xbf16>, vector<4x256xbf16>, vector<8x256xf32> -> vector<8x256xf32>
    %52 = arith.addf %44, %51 : vector<8x256xf32>
    %c255_i32 = arith.constant 255 : i32
    %53 = tpu.dynamic_rotate %1 by %c255_i32 dim 1 : vector<4x256xf32>, i32 -> vector<4x256xf32>
    %c5 = arith.constant 5 : index
    %c0_33 = arith.constant 0 : index
    %54 = vector.load %arg6[%c5, %c0_33] : memref<9x256xf32, #tpu.memory_space<vmem>>, vector<1x256xf32>
    %55 = vector.broadcast %54 : vector<1x256xf32> to vector<4x256xf32>
    %56 = arith.mulf %53, %55 : vector<4x256xf32>
    %c5_34 = arith.constant 5 : index
    %c0_35 = arith.constant 0 : index
    %c0_36 = arith.constant 0 : index
    %57 = vector.load %arg2[%c5_34, %c0_35, %c0_36] : memref<9x8x4xbf16, #tpu.memory_space<vmem>>, vector<1x8x4xbf16>
    %58 = vector.shape_cast %57 : vector<1x8x4xbf16> to vector<8x4xbf16>
    %59 = arith.truncf %56 : vector<4x256xf32> to vector<4x256xbf16>
    %cst_37 = arith.constant dense<0.000000e+00> : vector<8x256xf32>
    %60 = tpu.matmul %58, %59, %cst_37 {dimension_numbers = #tpu.dot_dimension_numbers<[1], [0], [0], [1], [0, 0, 1, 1], [], []>} : vector<8x4xbf16>, vector<4x256xbf16>, vector<8x256xf32> -> vector<8x256xf32>
    %61 = arith.addf %52, %60 : vector<8x256xf32>
    %c241_i32 = arith.constant 241 : i32
    %62 = tpu.dynamic_rotate %1 by %c241_i32 dim 1 : vector<4x256xf32>, i32 -> vector<4x256xf32>
    %c6 = arith.constant 6 : index
    %c0_38 = arith.constant 0 : index
    %63 = vector.load %arg6[%c6, %c0_38] : memref<9x256xf32, #tpu.memory_space<vmem>>, vector<1x256xf32>
    %64 = vector.broadcast %63 : vector<1x256xf32> to vector<4x256xf32>
    %65 = arith.mulf %62, %64 : vector<4x256xf32>
    %c6_39 = arith.constant 6 : index
    %c0_40 = arith.constant 0 : index
    %c0_41 = arith.constant 0 : index
    %66 = vector.load %arg2[%c6_39, %c0_40, %c0_41] : memref<9x8x4xbf16, #tpu.memory_space<vmem>>, vector<1x8x4xbf16>
    %67 = vector.shape_cast %66 : vector<1x8x4xbf16> to vector<8x4xbf16>
    %68 = arith.truncf %65 : vector<4x256xf32> to vector<4x256xbf16>
    %cst_42 = arith.constant dense<0.000000e+00> : vector<8x256xf32>
    %69 = tpu.matmul %67, %68, %cst_42 {dimension_numbers = #tpu.dot_dimension_numbers<[1], [0], [0], [1], [0, 0, 1, 1], [], []>} : vector<8x4xbf16>, vector<4x256xbf16>, vector<8x256xf32> -> vector<8x256xf32>
    %70 = arith.addf %61, %69 : vector<8x256xf32>
    %c240_i32 = arith.constant 240 : i32
    %71 = tpu.dynamic_rotate %1 by %c240_i32 dim 1 : vector<4x256xf32>, i32 -> vector<4x256xf32>
    %c7 = arith.constant 7 : index
    %c0_43 = arith.constant 0 : index
    %72 = vector.load %arg6[%c7, %c0_43] : memref<9x256xf32, #tpu.memory_space<vmem>>, vector<1x256xf32>
    %73 = vector.broadcast %72 : vector<1x256xf32> to vector<4x256xf32>
    %74 = arith.mulf %71, %73 : vector<4x256xf32>
    %c7_44 = arith.constant 7 : index
    %c0_45 = arith.constant 0 : index
    %c0_46 = arith.constant 0 : index
    %75 = vector.load %arg2[%c7_44, %c0_45, %c0_46] : memref<9x8x4xbf16, #tpu.memory_space<vmem>>, vector<1x8x4xbf16>
    %76 = vector.shape_cast %75 : vector<1x8x4xbf16> to vector<8x4xbf16>
    %77 = arith.truncf %74 : vector<4x256xf32> to vector<4x256xbf16>
    %cst_47 = arith.constant dense<0.000000e+00> : vector<8x256xf32>
    %78 = tpu.matmul %76, %77, %cst_47 {dimension_numbers = #tpu.dot_dimension_numbers<[1], [0], [0], [1], [0, 0, 1, 1], [], []>} : vector<8x4xbf16>, vector<4x256xbf16>, vector<8x256xf32> -> vector<8x256xf32>
    %79 = arith.addf %70, %78 : vector<8x256xf32>
    %c239_i32 = arith.constant 239 : i32
    %80 = tpu.dynamic_rotate %1 by %c239_i32 dim 1 : vector<4x256xf32>, i32 -> vector<4x256xf32>
    %c8 = arith.constant 8 : index
    %c0_48 = arith.constant 0 : index
    %81 = vector.load %arg6[%c8, %c0_48] : memref<9x256xf32, #tpu.memory_space<vmem>>, vector<1x256xf32>
    %82 = vector.broadcast %81 : vector<1x256xf32> to vector<4x256xf32>
    %83 = arith.mulf %80, %82 : vector<4x256xf32>
    %c8_49 = arith.constant 8 : index
    %c0_50 = arith.constant 0 : index
    %c0_51 = arith.constant 0 : index
    %84 = vector.load %arg2[%c8_49, %c0_50, %c0_51] : memref<9x8x4xbf16, #tpu.memory_space<vmem>>, vector<1x8x4xbf16>
    %85 = vector.shape_cast %84 : vector<1x8x4xbf16> to vector<8x4xbf16>
    %86 = arith.truncf %83 : vector<4x256xf32> to vector<4x256xbf16>
    %cst_52 = arith.constant dense<0.000000e+00> : vector<8x256xf32>
    %87 = tpu.matmul %85, %86, %cst_52 {dimension_numbers = #tpu.dot_dimension_numbers<[1], [0], [0], [1], [0, 0, 1, 1], [], []>} : vector<8x4xbf16>, vector<4x256xbf16>, vector<8x256xf32> -> vector<8x256xf32>
    %88 = arith.addf %79, %87 : vector<8x256xf32>
    %c0_53 = arith.constant 0 : index
    %89 = memref.load %arg7[%c0_53] : memref<2xf32, #tpu.memory_space<smem>>
    %cst_54 = arith.constant dense<0.000000e+00> : vector<8xf32>
    %90 = vector.multi_reduction <add>, %88, %cst_54 [1] : vector<8x256xf32> to vector<8xf32>
    %91 = vector.shape_cast %90 : vector<8xf32> to vector<8x1xf32>
    %cst_55 = arith.constant 2.560000e+02 : f32
    %92 = vector.broadcast %cst_55 : f32 to vector<8x1xf32>
    %93 = arith.divf %91, %92 : vector<8x1xf32>
    %94 = vector.broadcast %93 : vector<8x1xf32> to vector<8x256xf32>
    %95 = arith.subf %88, %94 : vector<8x256xf32>
    %96 = arith.mulf %95, %95 : vector<8x256xf32>
    %cst_56 = arith.constant dense<0.000000e+00> : vector<8xf32>
    %97 = vector.multi_reduction <add>, %96, %cst_56 [1] : vector<8x256xf32> to vector<8xf32>
    %98 = vector.shape_cast %97 : vector<8xf32> to vector<8x1xf32>
    %cst_57 = arith.constant 2.560000e+02 : f32
    %99 = vector.broadcast %cst_57 : f32 to vector<8x1xf32>
    %100 = arith.divf %98, %99 : vector<8x1xf32>
    %101 = vector.broadcast %93 : vector<8x1xf32> to vector<8x256xf32>
    %102 = arith.subf %88, %101 : vector<8x256xf32>
    %cst_58 = arith.constant 9.99999974E-6 : f32
    %103 = vector.broadcast %cst_58 : f32 to vector<8x1xf32>
    %104 = arith.addf %100, %103 : vector<8x1xf32>
    %105 = math.rsqrt %104 : vector<8x1xf32>
    %106 = vector.broadcast %105 : vector<8x1xf32> to vector<8x256xf32>
    %107 = arith.mulf %102, %106 : vector<8x256xf32>
    %cst_59 = arith.constant 0.000000e+00 : f32
    %108 = vector.broadcast %cst_59 : f32 to vector<8x256xf32>
    %109 = arith.cmpf oge, %107, %108 : vector<8x256xf32>
    %110 = vector.broadcast %89 : f32 to vector<8x256xf32>
    %111 = arith.mulf %110, %107 : vector<8x256xf32>
    %112 = arith.select %109, %107, %111 : vector<8x256xi1>, vector<8x256xf32>
    %cst_60 = arith.constant 0.000000e+00 : f32
    %113 = vector.broadcast %cst_60 : f32 to vector<8x256xf32>
    %c17_i32_61 = arith.constant 17 : i32
    %114 = tpu.dynamic_rotate %112 by %c17_i32_61 dim 1 : vector<8x256xf32>, i32 -> vector<8x256xf32>
    %c0_62 = arith.constant 0 : index
    %c0_63 = arith.constant 0 : index
    %115 = vector.load %arg6[%c0_62, %c0_63] : memref<9x256xf32, #tpu.memory_space<vmem>>, vector<1x256xf32>
    %116 = vector.broadcast %115 : vector<1x256xf32> to vector<8x256xf32>
    %117 = arith.mulf %114, %116 : vector<8x256xf32>
    %c0_64 = arith.constant 0 : index
    %c0_65 = arith.constant 0 : index
    %c0_66 = arith.constant 0 : index
    %118 = vector.load %arg3[%c0_64, %c0_65, %c0_66] : memref<9x8x8xbf16, #tpu.memory_space<vmem>>, vector<1x8x8xbf16>
    %119 = vector.shape_cast %118 : vector<1x8x8xbf16> to vector<8x8xbf16>
    %120 = arith.truncf %117 : vector<8x256xf32> to vector<8x256xbf16>
    %cst_67 = arith.constant dense<0.000000e+00> : vector<8x256xf32>
    %121 = tpu.matmul %119, %120, %cst_67 {dimension_numbers = #tpu.dot_dimension_numbers<[1], [0], [0], [1], [0, 0, 1, 1], [], []>} : vector<8x8xbf16>, vector<8x256xbf16>, vector<8x256xf32> -> vector<8x256xf32>
    %122 = arith.addf %113, %121 : vector<8x256xf32>
    %c16_i32_68 = arith.constant 16 : i32
    %123 = tpu.dynamic_rotate %112 by %c16_i32_68 dim 1 : vector<8x256xf32>, i32 -> vector<8x256xf32>
    %c1_69 = arith.constant 1 : index
    %c0_70 = arith.constant 0 : index
    %124 = vector.load %arg6[%c1_69, %c0_70] : memref<9x256xf32, #tpu.memory_space<vmem>>, vector<1x256xf32>
    %125 = vector.broadcast %124 : vector<1x256xf32> to vector<8x256xf32>
    %126 = arith.mulf %123, %125 : vector<8x256xf32>
    %c1_71 = arith.constant 1 : index
    %c0_72 = arith.constant 0 : index
    %c0_73 = arith.constant 0 : index
    %127 = vector.load %arg3[%c1_71, %c0_72, %c0_73] : memref<9x8x8xbf16, #tpu.memory_space<vmem>>, vector<1x8x8xbf16>
    %128 = vector.shape_cast %127 : vector<1x8x8xbf16> to vector<8x8xbf16>
    %129 = arith.truncf %126 : vector<8x256xf32> to vector<8x256xbf16>
    %cst_74 = arith.constant dense<0.000000e+00> : vector<8x256xf32>
    %130 = tpu.matmul %128, %129, %cst_74 {dimension_numbers = #tpu.dot_dimension_numbers<[1], [0], [0], [1], [0, 0, 1, 1], [], []>} : vector<8x8xbf16>, vector<8x256xbf16>, vector<8x256xf32> -> vector<8x256xf32>
    %131 = arith.addf %122, %130 : vector<8x256xf32>
    %c15_i32_75 = arith.constant 15 : i32
    %132 = tpu.dynamic_rotate %112 by %c15_i32_75 dim 1 : vector<8x256xf32>, i32 -> vector<8x256xf32>
    %c2_76 = arith.constant 2 : index
    %c0_77 = arith.constant 0 : index
    %133 = vector.load %arg6[%c2_76, %c0_77] : memref<9x256xf32, #tpu.memory_space<vmem>>, vector<1x256xf32>
    %134 = vector.broadcast %133 : vector<1x256xf32> to vector<8x256xf32>
    %135 = arith.mulf %132, %134 : vector<8x256xf32>
    %c2_78 = arith.constant 2 : index
    %c0_79 = arith.constant 0 : index
    %c0_80 = arith.constant 0 : index
    %136 = vector.load %arg3[%c2_78, %c0_79, %c0_80] : memref<9x8x8xbf16, #tpu.memory_space<vmem>>, vector<1x8x8xbf16>
    %137 = vector.shape_cast %136 : vector<1x8x8xbf16> to vector<8x8xbf16>
    %138 = arith.truncf %135 : vector<8x256xf32> to vector<8x256xbf16>
    %cst_81 = arith.constant dense<0.000000e+00> : vector<8x256xf32>
    %139 = tpu.matmul %137, %138, %cst_81 {dimension_numbers = #tpu.dot_dimension_numbers<[1], [0], [0], [1], [0, 0, 1, 1], [], []>} : vector<8x8xbf16>, vector<8x256xbf16>, vector<8x256xf32> -> vector<8x256xf32>
    %140 = arith.addf %131, %139 : vector<8x256xf32>
    %c1_i32_82 = arith.constant 1 : i32
    %141 = tpu.dynamic_rotate %112 by %c1_i32_82 dim 1 : vector<8x256xf32>, i32 -> vector<8x256xf32>
    %c3_83 = arith.constant 3 : index
    %c0_84 = arith.constant 0 : index
    %142 = vector.load %arg6[%c3_83, %c0_84] : memref<9x256xf32, #tpu.memory_space<vmem>>, vector<1x256xf32>
    %143 = vector.broadcast %142 : vector<1x256xf32> to vector<8x256xf32>
    %144 = arith.mulf %141, %143 : vector<8x256xf32>
    %c3_85 = arith.constant 3 : index
    %c0_86 = arith.constant 0 : index
    %c0_87 = arith.constant 0 : index
    %145 = vector.load %arg3[%c3_85, %c0_86, %c0_87] : memref<9x8x8xbf16, #tpu.memory_space<vmem>>, vector<1x8x8xbf16>
    %146 = vector.shape_cast %145 : vector<1x8x8xbf16> to vector<8x8xbf16>
    %147 = arith.truncf %144 : vector<8x256xf32> to vector<8x256xbf16>
    %cst_88 = arith.constant dense<0.000000e+00> : vector<8x256xf32>
    %148 = tpu.matmul %146, %147, %cst_88 {dimension_numbers = #tpu.dot_dimension_numbers<[1], [0], [0], [1], [0, 0, 1, 1], [], []>} : vector<8x8xbf16>, vector<8x256xbf16>, vector<8x256xf32> -> vector<8x256xf32>
    %149 = arith.addf %140, %148 : vector<8x256xf32>
    %c4_89 = arith.constant 4 : index
    %c0_90 = arith.constant 0 : index
    %150 = vector.load %arg6[%c4_89, %c0_90] : memref<9x256xf32, #tpu.memory_space<vmem>>, vector<1x256xf32>
    %151 = vector.broadcast %150 : vector<1x256xf32> to vector<8x256xf32>
    %152 = arith.mulf %112, %151 : vector<8x256xf32>
    %c4_91 = arith.constant 4 : index
    %c0_92 = arith.constant 0 : index
    %c0_93 = arith.constant 0 : index
    %153 = vector.load %arg3[%c4_91, %c0_92, %c0_93] : memref<9x8x8xbf16, #tpu.memory_space<vmem>>, vector<1x8x8xbf16>
    %154 = vector.shape_cast %153 : vector<1x8x8xbf16> to vector<8x8xbf16>
    %155 = arith.truncf %152 : vector<8x256xf32> to vector<8x256xbf16>
    %cst_94 = arith.constant dense<0.000000e+00> : vector<8x256xf32>
    %156 = tpu.matmul %154, %155, %cst_94 {dimension_numbers = #tpu.dot_dimension_numbers<[1], [0], [0], [1], [0, 0, 1, 1], [], []>} : vector<8x8xbf16>, vector<8x256xbf16>, vector<8x256xf32> -> vector<8x256xf32>
    %157 = arith.addf %149, %156 : vector<8x256xf32>
    %c255_i32_95 = arith.constant 255 : i32
    %158 = tpu.dynamic_rotate %112 by %c255_i32_95 dim 1 : vector<8x256xf32>, i32 -> vector<8x256xf32>
    %c5_96 = arith.constant 5 : index
    %c0_97 = arith.constant 0 : index
    %159 = vector.load %arg6[%c5_96, %c0_97] : memref<9x256xf32, #tpu.memory_space<vmem>>, vector<1x256xf32>
    %160 = vector.broadcast %159 : vector<1x256xf32> to vector<8x256xf32>
    %161 = arith.mulf %158, %160 : vector<8x256xf32>
    %c5_98 = arith.constant 5 : index
    %c0_99 = arith.constant 0 : index
    %c0_100 = arith.constant 0 : index
    %162 = vector.load %arg3[%c5_98, %c0_99, %c0_100] : memref<9x8x8xbf16, #tpu.memory_space<vmem>>, vector<1x8x8xbf16>
    %163 = vector.shape_cast %162 : vector<1x8x8xbf16> to vector<8x8xbf16>
    %164 = arith.truncf %161 : vector<8x256xf32> to vector<8x256xbf16>
    %cst_101 = arith.constant dense<0.000000e+00> : vector<8x256xf32>
    %165 = tpu.matmul %163, %164, %cst_101 {dimension_numbers = #tpu.dot_dimension_numbers<[1], [0], [0], [1], [0, 0, 1, 1], [], []>} : vector<8x8xbf16>, vector<8x256xbf16>, vector<8x256xf32> -> vector<8x256xf32>
    %166 = arith.addf %157, %165 : vector<8x256xf32>
    %c241_i32_102 = arith.constant 241 : i32
    %167 = tpu.dynamic_rotate %112 by %c241_i32_102 dim 1 : vector<8x256xf32>, i32 -> vector<8x256xf32>
    %c6_103 = arith.constant 6 : index
    %c0_104 = arith.constant 0 : index
    %168 = vector.load %arg6[%c6_103, %c0_104] : memref<9x256xf32, #tpu.memory_space<vmem>>, vector<1x256xf32>
    %169 = vector.broadcast %168 : vector<1x256xf32> to vector<8x256xf32>
    %170 = arith.mulf %167, %169 : vector<8x256xf32>
    %c6_105 = arith.constant 6 : index
    %c0_106 = arith.constant 0 : index
    %c0_107 = arith.constant 0 : index
    %171 = vector.load %arg3[%c6_105, %c0_106, %c0_107] : memref<9x8x8xbf16, #tpu.memory_space<vmem>>, vector<1x8x8xbf16>
    %172 = vector.shape_cast %171 : vector<1x8x8xbf16> to vector<8x8xbf16>
    %173 = arith.truncf %170 : vector<8x256xf32> to vector<8x256xbf16>
    %cst_108 = arith.constant dense<0.000000e+00> : vector<8x256xf32>
    %174 = tpu.matmul %172, %173, %cst_108 {dimension_numbers = #tpu.dot_dimension_numbers<[1], [0], [0], [1], [0, 0, 1, 1], [], []>} : vector<8x8xbf16>, vector<8x256xbf16>, vector<8x256xf32> -> vector<8x256xf32>
    %175 = arith.addf %166, %174 : vector<8x256xf32>
    %c240_i32_109 = arith.constant 240 : i32
    %176 = tpu.dynamic_rotate %112 by %c240_i32_109 dim 1 : vector<8x256xf32>, i32 -> vector<8x256xf32>
    %c7_110 = arith.constant 7 : index
    %c0_111 = arith.constant 0 : index
    %177 = vector.load %arg6[%c7_110, %c0_111] : memref<9x256xf32, #tpu.memory_space<vmem>>, vector<1x256xf32>
    %178 = vector.broadcast %177 : vector<1x256xf32> to vector<8x256xf32>
    %179 = arith.mulf %176, %178 : vector<8x256xf32>
    %c7_112 = arith.constant 7 : index
    %c0_113 = arith.constant 0 : index
    %c0_114 = arith.constant 0 : index
    %180 = vector.load %arg3[%c7_112, %c0_113, %c0_114] : memref<9x8x8xbf16, #tpu.memory_space<vmem>>, vector<1x8x8xbf16>
    %181 = vector.shape_cast %180 : vector<1x8x8xbf16> to vector<8x8xbf16>
    %182 = arith.truncf %179 : vector<8x256xf32> to vector<8x256xbf16>
    %cst_115 = arith.constant dense<0.000000e+00> : vector<8x256xf32>
    %183 = tpu.matmul %181, %182, %cst_115 {dimension_numbers = #tpu.dot_dimension_numbers<[1], [0], [0], [1], [0, 0, 1, 1], [], []>} : vector<8x8xbf16>, vector<8x256xbf16>, vector<8x256xf32> -> vector<8x256xf32>
    %184 = arith.addf %175, %183 : vector<8x256xf32>
    %c239_i32_116 = arith.constant 239 : i32
    %185 = tpu.dynamic_rotate %112 by %c239_i32_116 dim 1 : vector<8x256xf32>, i32 -> vector<8x256xf32>
    %c8_117 = arith.constant 8 : index
    %c0_118 = arith.constant 0 : index
    %186 = vector.load %arg6[%c8_117, %c0_118] : memref<9x256xf32, #tpu.memory_space<vmem>>, vector<1x256xf32>
    %187 = vector.broadcast %186 : vector<1x256xf32> to vector<8x256xf32>
    %188 = arith.mulf %185, %187 : vector<8x256xf32>
    %c8_119 = arith.constant 8 : index
    %c0_120 = arith.constant 0 : index
    %c0_121 = arith.constant 0 : index
    %189 = vector.load %arg3[%c8_119, %c0_120, %c0_121] : memref<9x8x8xbf16, #tpu.memory_space<vmem>>, vector<1x8x8xbf16>
    %190 = vector.shape_cast %189 : vector<1x8x8xbf16> to vector<8x8xbf16>
    %191 = arith.truncf %188 : vector<8x256xf32> to vector<8x256xbf16>
    %cst_122 = arith.constant dense<0.000000e+00> : vector<8x256xf32>
    %192 = tpu.matmul %190, %191, %cst_122 {dimension_numbers = #tpu.dot_dimension_numbers<[1], [0], [0], [1], [0, 0, 1, 1], [], []>} : vector<8x8xbf16>, vector<8x256xbf16>, vector<8x256xf32> -> vector<8x256xf32>
    %193 = arith.addf %184, %192 : vector<8x256xf32>
    %c1_123 = arith.constant 1 : index
    %194 = memref.load %arg7[%c1_123] : memref<2xf32, #tpu.memory_space<smem>>
    %cst_124 = arith.constant dense<0.000000e+00> : vector<8xf32>
    %195 = vector.multi_reduction <add>, %193, %cst_124 [1] : vector<8x256xf32> to vector<8xf32>
    %196 = vector.shape_cast %195 : vector<8xf32> to vector<8x1xf32>
    %cst_125 = arith.constant 2.560000e+02 : f32
    %197 = vector.broadcast %cst_125 : f32 to vector<8x1xf32>
    %198 = arith.divf %196, %197 : vector<8x1xf32>
    %199 = vector.broadcast %198 : vector<8x1xf32> to vector<8x256xf32>
    %200 = arith.subf %193, %199 : vector<8x256xf32>
    %201 = arith.mulf %200, %200 : vector<8x256xf32>
    %cst_126 = arith.constant dense<0.000000e+00> : vector<8xf32>
    %202 = vector.multi_reduction <add>, %201, %cst_126 [1] : vector<8x256xf32> to vector<8xf32>
    %203 = vector.shape_cast %202 : vector<8xf32> to vector<8x1xf32>
    %cst_127 = arith.constant 2.560000e+02 : f32
    %204 = vector.broadcast %cst_127 : f32 to vector<8x1xf32>
    %205 = arith.divf %203, %204 : vector<8x1xf32>
    %206 = vector.broadcast %198 : vector<8x1xf32> to vector<8x256xf32>
    %207 = arith.subf %193, %206 : vector<8x256xf32>
    %cst_128 = arith.constant 9.99999974E-6 : f32
    %208 = vector.broadcast %cst_128 : f32 to vector<8x1xf32>
    %209 = arith.addf %205, %208 : vector<8x1xf32>
    %210 = math.rsqrt %209 : vector<8x1xf32>
    %211 = vector.broadcast %210 : vector<8x1xf32> to vector<8x256xf32>
    %212 = arith.mulf %207, %211 : vector<8x256xf32>
    %cst_129 = arith.constant 0.000000e+00 : f32
    %213 = vector.broadcast %cst_129 : f32 to vector<8x256xf32>
    %214 = arith.cmpf oge, %212, %213 : vector<8x256xf32>
    %215 = vector.broadcast %194 : f32 to vector<8x256xf32>
    %216 = arith.mulf %215, %212 : vector<8x256xf32>
    %217 = arith.select %214, %212, %216 : vector<8x256xi1>, vector<8x256xf32>
    %218 = arith.addf %217, %7 : vector<8x256xf32>
    %c0_130 = arith.constant 0 : index
    %c0_131 = arith.constant 0 : index
    %c0_132 = arith.constant 0 : index
    %219 = vector.load %arg8[%c0_130, %c0_131, %c0_132] : memref<1x8x256xf32, #tpu.memory_space<vmem>>, vector<1x8x256xf32>
    %220 = vector.shape_cast %219 : vector<1x8x256xf32> to vector<8x256xf32>
    %221 = vector.shape_cast %218 : vector<8x256xf32> to vector<1x8x256xf32>
    tpu.vector_store %arg8[%c0_130, %c0_131, %c0_132], %221 {strides = array<i32>} : memref<1x8x256xf32, #tpu.memory_space<vmem>>, vector<1x8x256xf32>,
    return
  }
  func.func @transform_0(%arg0: i32) -> (i32, i32, i32) {
    %c0_i32 = arith.constant 0 : i32
    %c0_i32_0 = arith.constant 0 : i32
    %c0_i32_1 = arith.constant 0 : i32
    return %arg0, %c0_i32, %c0_i32_0 : i32, i32, i32
  }
  func.func @transform_1(%arg0: i32) -> (i32, i32, i32) {
    %c0_i32 = arith.constant 0 : i32
    %c0_i32_0 = arith.constant 0 : i32
    %c0_i32_1 = arith.constant 0 : i32
    %c0_i32_2 = arith.constant 0 : i32
    return %c0_i32, %c0_i32_0, %c0_i32_1 : i32, i32, i32
  }
  func.func @transform_2(%arg0: i32) -> (i32, i32, i32) {
    %c0_i32 = arith.constant 0 : i32
    %c0_i32_0 = arith.constant 0 : i32
    %c0_i32_1 = arith.constant 0 : i32
    %c0_i32_2 = arith.constant 0 : i32
    return %c0_i32, %c0_i32_0, %c0_i32_1 : i32, i32, i32
  }
  func.func @transform_3(%arg0: i32) -> (i32, i32) {
    %c0_i32 = arith.constant 0 : i32
    %c0_i32_0 = arith.constant 0 : i32
    %c0_i32_1 = arith.constant 0 : i32
    return %c0_i32, %c0_i32_0 : i32, i32
  }
  func.func @transform_4(%arg0: i32) -> (i32, i32) {
    %c0_i32 = arith.constant 0 : i32
    %c0_i32_0 = arith.constant 0 : i32
    %c0_i32_1 = arith.constant 0 : i32
    return %c0_i32, %c0_i32_0 : i32, i32
  }
  func.func @transform_5(%arg0: i32) -> (i32, i32) {
    %c0_i32 = arith.constant 0 : i32
    %c0_i32_0 = arith.constant 0 : i32
    %c0_i32_1 = arith.constant 0 : i32
    return %c0_i32, %c0_i32_0 : i32, i32
  }
  func.func @transform_6(%arg0: i32) -> i32 {
    %c0_i32 = arith.constant 0 : i32
    %c0_i32_0 = arith.constant 0 : i32
    return %c0_i32 : i32
  }
  func.func @transform_7(%arg0: i32) -> (i32, i32, i32) {
    %c0_i32 = arith.constant 0 : i32
    %c0_i32_0 = arith.constant 0 : i32
    %c0_i32_1 = arith.constant 0 : i32
    return %arg0, %c0_i32, %c0_i32_0 : i32, i32, i32
  }
}

</mosaic_0001>

<llo_original>
// kernel: tpu_custom_call.1
$region0: #{tpu_custom_call.1}
  #allocation0 [shape = 'u32[]', space=smem, size = 0x4, offset = 0x4, fixed_abs, tag = 'smem constant byte address 0x4 - core index']
  #allocation1 [shape = 'u32[144,128]{1,0:T(1,128)}', space=vmem, size = 0x12000, scoped, tag = 'internal scratch']
  %s0 = inlined_call_operand.vmem [shape: f32[2,4,256], index: 0, kind: input, shape index: {}]
  %s1 = inlined_call_operand.vmem [shape: bf16[9,8,4], index: 1, kind: input, shape index: {}]
  %s2 = inlined_call_operand.vmem [shape: bf16[9,8,8], index: 2, kind: input, shape index: {}]
  %s3 = inlined_call_operand.vmem [shape: bf16[8,4], index: 3, kind: input, shape index: {}]
  %s4 = inlined_call_operand.vmem [shape: f32[8,1], index: 4, kind: input, shape index: {}]
  %s5 = inlined_call_operand.vmem [shape: f32[9,256], index: 5, kind: input, shape index: {}]
  %s6 = inlined_call_operand.vmem [shape: f32[2], index: 6, kind: input, shape index: {}]
  %s7 = inlined_call_operand.hbm [shape: f32[2,8,256], index: 7, kind: output, shape index: {}]
  %s8 = sld [smem:[#allocation0]]
  $region65: #{tpu_custom_call.1} parent=0
    _
  %s10 = ssub.s32 1, %s8
  %s11 = scalar_select 0, %s10, %s8
  $region1: #{tpu_custom_call.1} parent=0
    #allocation2 [shape = 'u8[512]{0}', space=smem, size = 0x200, scoped, tag = 'input window, operand 6, single buffered']
    #allocation3 [shape = 's32[2]{0}', space=sflag, size = 0x8, scoped, tag = 'scoped memory for tpu_custom_call.1']
    #allocation4 [shape = 's32[2]{0}', space=sflag, size = 0x8, scoped, tag = 'scoped memory for tpu_custom_call.1']
    #allocation5 [shape = 'u8[16384]{0}', space=vmem, size = 0x4000, scoped, tag = 'output window, operand 0']
    %12 = vsyncpa [#allocation4], 0
    %13 = vsyncpa [#allocation3], 0
    %s14 = scalar_lea.sflag [#allocation3], 1
    %15 = vsyncpa %s14, 0
    loop: start=0, step=1, limit=4
    $region2: #{tpu_custom_call.1} parent=1 // loop_pre_header
      _
    $region3: #{tpu_custom_call.1} parent=1 // loop_header
      %s17 = sphi 0, %s21
      %p18 = scmp.ge.s32.totalorder %s17, 4
      %s27 = sphi 0, %s29
      %s30 = sphi 0, %s27
      %s31 = sphi 0, %s30
      %s47 = sphi 0, %s31
      %s51 = sphi 0, %s51
      %s53 = sphi 0, %s51
      %s54 = sphi 0, %s53
      %s68 = sphi 0, %s54
      %s72 = sphi 0, %s72
      %s74 = sphi 0, %s72
      %s75 = sphi 0, %s74
      %s89 = sphi 0, %s75
      %s93 = sphi 0, %s93
      %s95 = sphi 0, %s93
      %s96 = sphi 0, %s95
      %s110 = sphi 0, %s96
      %s114 = sphi 0, %s114
      %s116 = sphi 0, %s114
      %s117 = sphi 0, %s116
      %s131 = sphi 0, %s117
      %s135 = sphi 0, %s135
      %s137 = sphi 0, %s135
      %s138 = sphi 0, %s137
      %s152 = sphi 0, %s138
      %s156 = sphi 0, %s156
      %s158 = sphi 0, %s156
      %s159 = sphi 0, %s158
      %s173 = sphi 0, %s159
      %s179 = sphi 0, %s181
      %s182 = sphi 0, %s179
      %s183 = sphi 0, %s182
      %s199 = sphi 0, %s183
    $region4: #{tpu_custom_call.1} parent=1 // loop_header_branch
      %20 = sbr.rel (%p18) target = $region8
    $region5: #{tpu_custom_call.1} parent=1 // loop_body
      %s22 = ssub.s32 %s17, 1
      %s23 = ssub.s32 %s17, 2
      %s24 = sadd.s32 %s17, 1
      %s25 = ssub.s32 %s17, %s24
      %p26 = scmp.eq.s32.totalorder %s25, 0
      %s28 = sadd.s32 %s27, 1
      %s29 = scalar_select %p26, %s27, %s28
      %p32 = pneg %p26
      %p33 = scmp.eq.s32.totalorder %s17, 1
      %p34 = por %p32, %p33
      %p35 = scmp.ne.s32.totalorder %s27, %s30
      %p36 = scmp.eq.s32.totalorder %s17, 0
      %p37 = por %p35, %p36
      %p38 = scmp.ne.s32.totalorder %s27, %s30
      %p39 = scmp.eq.s32.totalorder %s22, 1
      %p40 = por %p38, %p39
      %p41 = scmp.ne.s32.totalorder %s30, %s31
      %p42 = scmp.eq.s32.totalorder %s22, 0
      %p43 = por %p41, %p42
      %p44 = scmp.ne.s32.totalorder %s30, %s31
      %p45 = scmp.eq.s32.totalorder %s23, 1
      %p46 = por %p44, %p45
      %p48 = scmp.ne.s32.totalorder %s31, %s47
      %p49 = scmp.eq.s32.totalorder %s23, 0
      %p50 = por %p48, %p49
      %s52 = sadd.s32 %s51, 1
      %p55 = scmp.eq.s32.totalorder %s17, 1
      %p56 = scmp.ne.s32.totalorder %s51, %s53
      %p57 = scmp.eq.s32.totalorder %s17, 0
      %p58 = por %p56, %p57
      %p59 = scmp.ne.s32.totalorder %s51, %s53
      %p60 = scmp.eq.s32.totalorder %s22, 1
      %p61 = por %p59, %p60
      %p62 = scmp.ne.s32.totalorder %s53, %s54
      %p63 = scmp.eq.s32.totalorder %s22, 0
      %p64 = por %p62, %p63
      %p65 = scmp.ne.s32.totalorder %s53, %s54
      %p66 = scmp.eq.s32.totalorder %s23, 1
      %p67 = por %p65, %p66
      %p69 = scmp.ne.s32.totalorder %s54, %s68
      %p70 = scmp.eq.s32.totalorder %s23, 0
      %p71 = por %p69, %p70
      %s73 = sadd.s32 %s72, 1
      %p76 = scmp.eq.s32.totalorder %s17, 1
      %p77 = scmp.ne.s32.totalorder %s72, %s74
      %p78 = scmp.eq.s32.totalorder %s17, 0
      %p79 = por %p77, %p78
      %p80 = scmp.ne.s32.totalorder %s72, %s74
      %p81 = scmp.eq.s32.totalorder %s22, 1
      %p82 = por %p80, %p81
      %p83 = scmp.ne.s32.totalorder %s74, %s75
      %p84 = scmp.eq.s32.totalorder %s22, 0
      %p85 = por %p83, %p84
      %p86 = scmp.ne.s32.totalorder %s74, %s75
      %p87 = scmp.eq.s32.totalorder %s23, 1
      %p88 = por %p86, %p87
      %p90 = scmp.ne.s32.totalorder %s75, %s89
      %p91 = scmp.eq.s32.totalorder %s23, 0
      %p92 = por %p90, %p91
      %s94 = sadd.s32 %s93, 1
      %p97 = scmp.eq.s32.totalorder %s17, 1
      %p98 = scmp.ne.s32.totalorder %s93, %s95
      %p99 = scmp.eq.s32.totalorder %s17, 0
      %p100 = por %p98, %p99
      %p101 = scmp.ne.s32.totalorder %s93, %s95
      %p102 = scmp.eq.s32.totalorder %s22, 1
      %p103 = por %p101, %p102
      %p104 = scmp.ne.s32.totalorder %s95, %s96
      %p105 = scmp.eq.s32.totalorder %s22, 0
      %p106 = por %p104, %p105
      %p107 = scmp.ne.s32.totalorder %s95, %s96
      %p108 = scmp.eq.s32.totalorder %s23, 1
      %p109 = por %p107, %p108
      %p111 = scmp.ne.s32.totalorder %s96, %s110
      %p112 = scmp.eq.s32.totalorder %s23, 0
      %p113 = por %p111, %p112
      %s115 = sadd.s32 %s114, 1
      %p118 = scmp.eq.s32.totalorder %s17, 1
      %p119 = scmp.ne.s32.totalorder %s114, %s116
      %p120 = scmp.eq.s32.totalorder %s17, 0
      %p121 = por %p119, %p120
      %p122 = scmp.ne.s32.totalorder %s114, %s116
      %p123 = scmp.eq.s32.totalorder %s22, 1
      %p124 = por %p122, %p123
      %p125 = scmp.ne.s32.totalorder %s116, %s117
      %p126 = scmp.eq.s32.totalorder %s22, 0
      %p127 = por %p125, %p126
      %p128 = scmp.ne.s32.totalorder %s116, %s117
      %p129 = scmp.eq.s32.totalorder %s23, 1
      %p130 = por %p128, %p129
      %p132 = scmp.ne.s32.totalorder %s117, %s131
      %p133 = scmp.eq.s32.totalorder %s23, 0
      %p134 = por %p132, %p133
      %s136 = sadd.s32 %s135, 1
      %p139 = scmp.eq.s32.totalorder %s17, 1
      %p140 = scmp.ne.s32.totalorder %s135, %s137
      %p141 = scmp.eq.s32.totalorder %s17, 0
      %p142 = por %p140, %p141
      %p143 = scmp.ne.s32.totalorder %s135, %s137
      %p144 = scmp.eq.s32.totalorder %s22, 1
      %p145 = por %p143, %p144
      %p146 = scmp.ne.s32.totalorder %s137, %s138
      %p147 = scmp.eq.s32.totalorder %s22, 0
      %p148 = por %p146, %p147
      %p149 = scmp.ne.s32.totalorder %s137, %s138
      %p150 = scmp.eq.s32.totalorder %s23, 1
      %p151 = por %p149, %p150
      %p153 = scmp.ne.s32.totalorder %s138, %s152
      %p154 = scmp.eq.s32.totalorder %s23, 0
      %p155 = por %p153, %p154
      %s157 = sadd.s32 %s156, 1
      %p160 = scmp.eq.s32.totalorder %s17, 1
      %p161 = scmp.ne.s32.totalorder %s156, %s158
      %p162 = scmp.eq.s32.totalorder %s17, 0
      %p163 = por %p161, %p162
      %p164 = scmp.ne.s32.totalorder %s156, %s158
      %p165 = scmp.eq.s32.totalorder %s22, 1
      %p166 = por %p164, %p165
      %p167 = scmp.ne.s32.totalorder %s158, %s159
      %p168 = scmp.eq.s32.totalorder %s22, 0
      %p169 = por %p167, %p168
      %p170 = scmp.ne.s32.totalorder %s158, %s159
      %p171 = scmp.eq.s32.totalorder %s23, 1
      %p172 = por %p170, %p171
      %p174 = scmp.ne.s32.totalorder %s159, %s173
      %p175 = scmp.eq.s32.totalorder %s23, 0
      %p176 = por %p174, %p175
      %s177 = ssub.s32 %s17, %s24
      %p178 = scmp.eq.s32.totalorder %s177, 0
      %s180 = sadd.s32 %s179, 1
      %s181 = scalar_select %p178, %s179, %s180
      %p184 = pneg %p178
      %p185 = scmp.eq.s32.totalorder %s17, 1
      %p186 = por %p184, %p185
      %p187 = scmp.ne.s32.totalorder %s179, %s182
      %p188 = scmp.eq.s32.totalorder %s17, 0
      %p189 = por %p187, %p188
      %p190 = scmp.ne.s32.totalorder %s179, %s182
      %p191 = scmp.eq.s32.totalorder %s22, 1
      %p192 = por %p190, %p191
      %p193 = scmp.ne.s32.totalorder %s182, %s183
      %p194 = scmp.eq.s32.totalorder %s22, 0
      %p195 = por %p193, %p194
      %p196 = scmp.ne.s32.totalorder %s182, %s183
      %p197 = scmp.eq.s32.totalorder %s23, 1
      %p198 = por %p196, %p197
      %p200 = scmp.ne.s32.totalorder %s183, %s199
      %p201 = scmp.eq.s32.totalorder %s23, 0
      %p202 = por %p200, %p201
      %p203 = scmp.le.s32.totalorder 1, %s17
      %p204 = scmp.lt.s32.totalorder %s17, 3
      %p205 = pnand %p203, %p204
      %p206 = pneg %p205
      // Predicated region
      $region9: #{tpu_custom_call.1} parent=5 // pred_check
        _
      $region10: #{tpu_custom_call.1} parent=5 // pred_check_branch
        %208 = sbr.rel (%p205) target = $region12
      $region11: #{tpu_custom_call.1} parent=5 // pred_region
        %s209 = ssub.s32 %s17, 1
        // Predicated region
        $region13: #{tpu_custom_call.1} parent=11 // pred_check
          %p210 = pneg %p64
        $region14: #{tpu_custom_call.1} parent=11 // pred_check_branch
          %212 = sbr.rel (%p210) target = $region16
        $region15: #{tpu_custom_call.1} parent=11 // pred_region
          _
        $region16: #{tpu_custom_call.1} parent=11 // pred_fallthru
          _
        // Predicated region
        $region17: #{tpu_custom_call.1} parent=11 // pred_check
          %p213 = pneg %p85
        $region18: #{tpu_custom_call.1} parent=11 // pred_check_branch
          %215 = sbr.rel (%p213) target = $region20
        $region19: #{tpu_custom_call.1} parent=11 // pred_region
          _
        $region20: #{tpu_custom_call.1} parent=11 // pred_fallthru
          _
        // Predicated region
        $region21: #{tpu_custom_call.1} parent=11 // pred_check
          %p216 = pneg %p106
        $region22: #{tpu_custom_call.1} parent=11 // pred_check_branch
          %218 = sbr.rel (%p216) target = $region24
        $region23: #{tpu_custom_call.1} parent=11 // pred_region
          _
        $region24: #{tpu_custom_call.1} parent=11 // pred_fallthru
          _
        // Predicated region
        $region25: #{tpu_custom_call.1} parent=11 // pred_check
          %p219 = pneg %p127
        $region26: #{tpu_custom_call.1} parent=11 // pred_check_branch
          %221 = sbr.rel (%p219) target = $region28
        $region27: #{tpu_custom_call.1} parent=11 // pred_region
          _
        $region28: #{tpu_custom_call.1} parent=11 // pred_fallthru
          _
        // Predicated region
        $region29: #{tpu_custom_call.1} parent=11 // pred_check
          %p222 = pneg %p148
        $region30: #{tpu_custom_call.1} parent=11 // pred_check_branch
          %224 = sbr.rel (%p222) target = $region32
        $region31: #{tpu_custom_call.1} parent=11 // pred_region
          _
        $region32: #{tpu_custom_call.1} parent=11 // pred_fallthru
          _
        // Predicated region
        $region33: #{tpu_custom_call.1} parent=11 // pred_check
          %p225 = pneg %p169
        $region34: #{tpu_custom_call.1} parent=11 // pred_check_branch
          %227 = sbr.rel (%p225) target = $region36
        $region35: #{tpu_custom_call.1} parent=11 // pred_region
          %s229 = ssub.s32 16, 16
          %230 = vsyncadd [#allocation4], %s229
          %s232 = sshll.u32 %s6, 4
          %s233 = int_to_ptr.vmem [resolvable:$true] %s232
          %235 = dma.vmem_to_smem %s233, 16, [#allocation2], [#allocation4]
        $region36: #{tpu_custom_call.1} parent=11 // pred_fallthru
          _
      $region12: #{tpu_custom_call.1} parent=5 // pred_fallthru
        _
      %p236 = scmp.lt.s32.totalorder %s17, 2
      // Predicated region
      $region37: #{tpu_custom_call.1} parent=5 // pred_check
        %p237 = pneg %p236
      $region38: #{tpu_custom_call.1} parent=5 // pred_check_branch
        %239 = sbr.rel (%p237) target = $region40
      $region39: #{tpu_custom_call.1} parent=5 // pred_region
        // Predicated region
        $region41: #{tpu_custom_call.1} parent=39 // pred_check
          %p240 = pneg %p37
        $region42: #{tpu_custom_call.1} parent=39 // pred_check_branch
          %242 = sbr.rel (%p240) target = $region44
        $region43: #{tpu_custom_call.1} parent=39 // pred_region
          %p243 = scmp.lt.s32.totalorder %s17, 1
          %s244 = scalar_select %p243, %s17, 1
          %s245 = smul.addr %s244, 2
          %s246 = smul.addr %s245, 4
          %s247 = scalar_lea.vmem %s0, %s246
        $region44: #{tpu_custom_call.1} parent=39 // pred_fallthru
          _
      $region40: #{tpu_custom_call.1} parent=5 // pred_fallthru
        _
      %p248 = scmp.le.s32.totalorder 1, %s17
      %p249 = scmp.lt.s32.totalorder %s17, 3
      %p250 = pnand %p248, %p249
      %p251 = pneg %p250
      // Predicated region
      $region45: #{tpu_custom_call.1} parent=5 // pred_check
        _
      $region46: #{tpu_custom_call.1} parent=5 // pred_check_branch
        %253 = sbr.rel (%p250) target = $region48
      $region47: #{tpu_custom_call.1} parent=5 // pred_region
        %s254 = ssub.s32 %s17, 1
        // Predicated region
        $region49: #{tpu_custom_call.1} parent=47 // pred_check
          %p255 = pneg %p169
        $region50: #{tpu_custom_call.1} parent=47 // pred_check_branch
          %257 = sbr.rel (%p255) target = $region52
        $region51: #{tpu_custom_call.1} parent=47 // pred_region
          %258 = dma.done [#allocation4], 16
        $region52: #{tpu_custom_call.1} parent=47 // pred_fallthru
          _
        %259 = sfence
        %p260 = scmp.lt.s32.totalorder %s22, 1
        %s261 = scalar_select %p260, %s22, 1
        %s262 = smul.addr %s261, 2
        %s263 = smul.addr %s262, 4
        %s264 = scalar_lea.vmem %s0, %s263
        %p265 = pneg %p43
        %p266 = pneg %p40
        %p267 = pneg %p64
        %p268 = pneg %p61
        %p269 = pneg %p85
        %p270 = pneg %p82
        %p271 = pneg %p106
        %p272 = pneg %p103
        %p273 = pneg %p127
        %p274 = pneg %p124
        %p275 = pneg %p148
        %p276 = pneg %p145
        %p277 = pneg %p169
        %p278 = pneg %p166
        %p279 = pneg %p195
        %p280 = pneg %p192
        %s281 = sand.u32 %s182, 1
        %s282 = scalar_lea.sflag [#allocation3], %s281
        %s283 = sand.u32 %s182, 1
        %s284 = smul.addr %s283, 16
        %s285 = scalar_lea.vmem [#allocation5], %s284
        %p286 = scmp.lt.s32.totalorder %s22, 1
        %s287 = scalar_select %p286, %s22, 1
        %s288 = smul.addr %s287, 2
        %s289 = smul.addr %s288, 4
        %s290 = scalar_lea.vmem %s0, %s289
        %v292 = vld [vmem:[%s290] sm:$0xff]
        %v293 = vld [vmem:[%s3] sm:$0xf]
        %v295 = vcombine.high %v292, %v292
        %v297 = vpack.c.bf16 %v292, %v292
        %v298 = vpack.c.bf16 %v295, %v295
        %v299 = vld [vmem:[%s4] sm:$0xff]
        %301 = vset.pattern.permute.xlu0 0
        %302 = vperm.xlu0 %301, %v299
        %v303 = vpop.permute.xlu0 %302
        %vm305 = vcmask 31744
        %v307 = vsel %vm305, %v293, 0
        %vm309 = vcmask 1041408
        %v311 = vsel %vm309, %v297, 0
        %v314 = vsel %vm309, %v298, 0
        %316 = vmatprep.subr.bf16.mxu0 %v314
        %317 = vmatpush1.bf16.msra.mxu0 %v311
        %318 = vmatprep.subr.bf16.mxu0 0
        %319 = vmatpush1.bf16.msra.mxu0 0
        %320 = vmatprep.subr.bf16.mxu0 0
        %321 = vmatpush1.bf16.msra.mxu0 0
        %322 = vmatprep.subr.bf16.mxu0 0
        %323 = vmatpush1.bf16.msra.mxu0 0
        %324 = vmatprep.subr.bf16.mxu0 0
        %325 = vmatpush1.bf16.msra.mxu0 0
        %326 = vmatprep.subr.bf16.mxu0 0
        %327 = vmatpush1.bf16.msra.mxu0 0
        %328 = vmatprep.subr.bf16.mxu0 0
        %329 = vmatpush1.bf16.msra.mxu0 0
        %330 = vmatprep.subr.bf16.mxu0 0
        %331 = vmatpush1.bf16.msra.mxu0 0
        %332 = vmatprep.subr.bf16.mxu0 0
        %333 = vmatpush1.bf16.msra.mxu0 0
        %334 = vmatprep.subr.bf16.mxu0 0
        %335 = vmatpush1.bf16.msra.mxu0 0
        %336 = vmatprep.subr.bf16.mxu0 0
        %337 = vmatpush1.bf16.msra.mxu0 0
        %338 = vmatprep.subr.bf16.mxu0 0
        %339 = vmatpush1.bf16.msra.mxu0 0
        %340 = vmatprep.subr.bf16.mxu0 0
        %341 = vmatpush1.bf16.msra.mxu0 0
        %342 = vmatprep.subr.bf16.mxu0 0
        %343 = vmatpush1.bf16.msra.mxu0 0
        %344 = vmatprep.subr.bf16.mxu0 0
        %345 = vmatpush1.bf16.msra.mxu0 0
        %346 = vmatprep.subr.bf16.mxu0 0
        %347 = vmatpush1.bf16.msra.mxu0 0
        %348 = vmatprep.mubr.bf16.mxu0 0
        %349 = vmatmul.mubr.bf16.gmra.mrb[0].mxu0 %v307
        %v350 = vpop.f32.mrb[0].mxu0
        %v351 = vadd.f32 %v303, %v350
        %v352 = vpop.f32.mrb[0].mxu0
        %v353 = vadd.f32 %v303, %v352
        %v354 = vpop.f32.mrb[0].mxu0
        %v355 = vpop.f32.mrb[0].mxu0
        %356 = vdwg.mxu0
        %357 = vrot.lane.b32.xlu0 %v292, 17
        %v358 = vpop.permute.xlu0 %357
        %359 = vrot.lane.b32.xlu0 %v295, 17
        %v360 = vpop.permute.xlu0 %359
        %v361 = vlaneseq
        %v362 = vand.u32 %v361, 127
        %vm363 = vcmp.lt.s32.totalorder %v362, 17
        %v364 = vsel %vm363, %v358, %v360
        %v365 = vsel %vm363, %v360, %v358
        %v366 = vld [vmem:[%s5] ss:$8 sm:$0x3]
        %v368 = vlaneseq
        %v369 = vshrl.u32 %v368, 7
        %v370 = vsub.s32 0, %v369
        %v371 = vrot.slane %v366, %v370
        %v372 = vlaneseq
        %v373 = vshrl.u32 %v372, 7
        %v374 = vsub.s32 1, %v373
        %v375 = vrot.slane %v366, %v374
        %v378 = vmul.f32 %v365, %v371
        %v379 = vmul.f32 %v364, %v375
        %v380 = vld [vmem:[%s1] sm:$0xf]
        %v381 = vpack.c.bf16 %v378, %v378
        %v382 = vpack.c.bf16 %v379, %v379
        %383 = vrot.lane.b32.xlu0 %v292, 16
        %v384 = vpop.permute.xlu0 %383
        %385 = vrot.lane.b32.xlu0 %v295, 16
        %v386 = vpop.permute.xlu0 %385
        %vm387 = vcmp.lt.s32.totalorder %v362, 16
        %v388 = vsel %vm387, %v384, %v386
        %v389 = vsel %vm387, %v386, %v384
        %s390 = scalar_lea.vmem %s5, 1
        %v391 = vld [vmem:[%s390] ss:$8 sm:$0x3]
        %v393 = vlaneseq
        %v394 = vshrl.u32 %v393, 7
        %v395 = vsub.s32 0, %v394
        %v396 = vrot.slane %v391, %v395
        %v397 = vlaneseq
        %v398 = vshrl.u32 %v397, 7
        %v399 = vsub.s32 1, %v398
        %v400 = vrot.slane %v391, %v399
        %v403 = vmul.f32 %v389, %v396
        %v404 = vmul.f32 %v388, %v400
        %s405 = scalar_lea.vmem %s1, 4
        %v406 = vld [vmem:[%s405] sm:$0xf]
        %v407 = vpack.c.bf16 %v403, %v403
        %v408 = vpack.c.bf16 %v404, %v404
        %v410 = vsel %vm305, %v406, 0
        %v413 = vsel %vm309, %v407, 0
        %v416 = vsel %vm309, %v408, 0
        %418 = vmatprep.subr.bf16.mxu0 %v416
        %419 = vmatpush1.bf16.msra.mxu0 %v413
        %420 = vmatprep.subr.bf16.mxu0 0
        %421 = vmatpush1.bf16.msra.mxu0 0
        %422 = vmatprep.subr.bf16.mxu0 0
        %423 = vmatpush1.bf16.msra.mxu0 0
        %424 = vmatprep.subr.bf16.mxu0 0
        %425 = vmatpush1.bf16.msra.mxu0 0
        %426 = vmatprep.subr.bf16.mxu0 0
        %427 = vmatpush1.bf16.msra.mxu0 0
        %428 = vmatprep.subr.bf16.mxu0 0
        %429 = vmatpush1.bf16.msra.mxu0 0
        %430 = vmatprep.subr.bf16.mxu0 0
        %431 = vmatpush1.bf16.msra.mxu0 0
        %432 = vmatprep.subr.bf16.mxu0 0
        %433 = vmatpush1.bf16.msra.mxu0 0
        %434 = vmatprep.subr.bf16.mxu0 0
        %435 = vmatpush1.bf16.msra.mxu0 0
        %436 = vmatprep.subr.bf16.mxu0 0
        %437 = vmatpush1.bf16.msra.mxu0 0
        %438 = vmatprep.subr.bf16.mxu0 0
        %439 = vmatpush1.bf16.msra.mxu0 0
        %440 = vmatprep.subr.bf16.mxu0 0
        %441 = vmatpush1.bf16.msra.mxu0 0
        %442 = vmatprep.subr.bf16.mxu0 0
        %443 = vmatpush1.bf16.msra.mxu0 0
        %444 = vmatprep.subr.bf16.mxu0 0
        %445 = vmatpush1.bf16.msra.mxu0 0
        %446 = vmatprep.subr.bf16.mxu0 0
        %447 = vmatpush1.bf16.msra.mxu0 0
        %448 = vmatprep.subr.bf16.mxu0 0
        %449 = vmatpush1.bf16.msra.mxu0 0
        %450 = vmatprep.mubr.bf16.mxu0 0
        %451 = vmatmul.mubr.bf16.gmra.mrb[0].mxu0 %v410
        %v452 = vpop.f32.mrb[0].mxu0
        %v453 = vadd.f32 0.0, %v452
        %v454 = vpop.f32.mrb[0].mxu0
        %v455 = vadd.f32 0.0, %v454
        %v456 = vpop.f32.mrb[0].mxu0
        %v457 = vpop.f32.mrb[0].mxu0
        %458 = vdwg.mxu0
        %v460 = vsel %vm305, %v380, 0
        %v463 = vsel %vm309, %v381, 0
        %v466 = vsel %vm309, %v382, 0
        %468 = vmatprep.subr.bf16.mxu0 %v466
        %469 = vmatpush1.bf16.msra.mxu0 %v463
        %470 = vmatprep.subr.bf16.mxu0 0
        %471 = vmatpush1.bf16.msra.mxu0 0
        %472 = vmatprep.subr.bf16.mxu0 0
        %473 = vmatpush1.bf16.msra.mxu0 0
        %474 = vmatprep.subr.bf16.mxu0 0
        %475 = vmatpush1.bf16.msra.mxu0 0
        %476 = vmatprep.subr.bf16.mxu0 0
        %477 = vmatpush1.bf16.msra.mxu0 0
        %478 = vmatprep.subr.bf16.mxu0 0
        %479 = vmatpush1.bf16.msra.mxu0 0
        %480 = vmatprep.subr.bf16.mxu0 0
        %481 = vmatpush1.bf16.msra.mxu0 0
        %482 = vmatprep.subr.bf16.mxu0 0
        %483 = vmatpush1.bf16.msra.mxu0 0
        %484 = vmatprep.subr.bf16.mxu0 0
        %485 = vmatpush1.bf16.msra.mxu0 0
        %486 = vmatprep.subr.bf16.mxu0 0
        %487 = vmatpush1.bf16.msra.mxu0 0
        %488 = vmatprep.subr.bf16.mxu0 0
        %489 = vmatpush1.bf16.msra.mxu0 0
        %490 = vmatprep.subr.bf16.mxu0 0
        %491 = vmatpush1.bf16.msra.mxu0 0
        %492 = vmatprep.subr.bf16.mxu0 0
        %493 = vmatpush1.bf16.msra.mxu0 0
        %494 = vmatprep.subr.bf16.mxu0 0
        %495 = vmatpush1.bf16.msra.mxu0 0
        %496 = vmatprep.subr.bf16.mxu0 0
        %497 = vmatpush1.bf16.msra.mxu0 0
        %498 = vmatprep.subr.bf16.mxu0 0
        %499 = vmatpush1.bf16.msra.mxu0 0
        %500 = vmatprep.mubr.bf16.mxu0 0
        %501 = vmatmul.mubr.bf16.gmra.mrb[0].mxu0 %v460
        %v502 = vpop.f32.mrb[0].mxu0
        %v503 = vadd.f32 %v453, %v502
        %v504 = vpop.f32.mrb[0].mxu0
        %v505 = vadd.f32 %v455, %v504
        %v506 = vpop.f32.mrb[0].mxu0
        %v507 = vpop.f32.mrb[0].mxu0
        %508 = vdwg.mxu0
        %509 = vrot.lane.b32.xlu0 %v292, 15
        %v510 = vpop.permute.xlu0 %509
        %511 = vrot.lane.b32.xlu0 %v295, 15
        %v512 = vpop.permute.xlu0 %511
        %vm513 = vcmp.lt.s32.totalorder %v362, 15
        %v514 = vsel %vm513, %v510, %v512
        %v515 = vsel %vm513, %v512, %v510
        %s516 = scalar_lea.vmem %s5, 2
        %v517 = vld [vmem:[%s516] ss:$8 sm:$0x3]
        %v519 = vlaneseq
        %v520 = vshrl.u32 %v519, 7
        %v521 = vsub.s32 0, %v520
        %v522 = vrot.slane %v517, %v521
        %v523 = vlaneseq
        %v524 = vshrl.u32 %v523, 7
        %v525 = vsub.s32 1, %v524
        %v526 = vrot.slane %v517, %v525
        %v529 = vmul.f32 %v515, %v522
        %v530 = vmul.f32 %v514, %v526
        %s531 = scalar_lea.vmem %s1, 8
        %v532 = vld [vmem:[%s531] sm:$0xf]
        %v533 = vpack.c.bf16 %v529, %v529
        %v534 = vpack.c.bf16 %v530, %v530
        %v536 = vsel %vm305, %v532, 0
        %v539 = vsel %vm309, %v533, 0
        %v542 = vsel %vm309, %v534, 0
        %544 = vmatprep.subr.bf16.mxu0 %v542
        %545 = vmatpush1.bf16.msra.mxu0 %v539
        %546 = vmatprep.subr.bf16.mxu0 0
        %547 = vmatpush1.bf16.msra.mxu0 0
        %548 = vmatprep.subr.bf16.mxu0 0
        %549 = vmatpush1.bf16.msra.mxu0 0
        %550 = vmatprep.subr.bf16.mxu0 0
        %551 = vmatpush1.bf16.msra.mxu0 0
        %552 = vmatprep.subr.bf16.mxu0 0
        %553 = vmatpush1.bf16.msra.mxu0 0
        %554 = vmatprep.subr.bf16.mxu0 0
        %555 = vmatpush1.bf16.msra.mxu0 0
        %556 = vmatprep.subr.bf16.mxu0 0
        %557 = vmatpush1.bf16.msra.mxu0 0
        %558 = vmatprep.subr.bf16.mxu0 0
        %559 = vmatpush1.bf16.msra.mxu0 0
        %560 = vmatprep.subr.bf16.mxu0 0
        %561 = vmatpush1.bf16.msra.mxu0 0
        %562 = vmatprep.subr.bf16.mxu0 0
        %563 = vmatpush1.bf16.msra.mxu0 0
        %564 = vmatprep.subr.bf16.mxu0 0
        %565 = vmatpush1.bf16.msra.mxu0 0
        %566 = vmatprep.subr.bf16.mxu0 0
        %567 = vmatpush1.bf16.msra.mxu0 0
        %568 = vmatprep.subr.bf16.mxu0 0
        %569 = vmatpush1.bf16.msra.mxu0 0
        %570 = vmatprep.subr.bf16.mxu0 0
        %571 = vmatpush1.bf16.msra.mxu0 0
        %572 = vmatprep.subr.bf16.mxu0 0
        %573 = vmatpush1.bf16.msra.mxu0 0
        %574 = vmatprep.subr.bf16.mxu0 0
        %575 = vmatpush1.bf16.msra.mxu0 0
        %576 = vmatprep.mubr.bf16.mxu0 0
        %577 = vmatmul.mubr.bf16.gmra.mrb[0].mxu0 %v536
        %v578 = vpop.f32.mrb[0].mxu0
        %v579 = vadd.f32 0.0, %v578
        %v580 = vpop.f32.mrb[0].mxu0
        %v581 = vadd.f32 0.0, %v580
        %v582 = vpop.f32.mrb[0].mxu0
        %v583 = vpop.f32.mrb[0].mxu0
        %584 = vdwg.mxu0
        %v585 = vadd.f32 %v503, %v579
        %v586 = vadd.f32 %v505, %v581
        %587 = vrot.lane.b32.xlu0 %v292, 1
        %v588 = vpop.permute.xlu0 %587
        %589 = vrot.lane.b32.xlu0 %v295, 1
        %v590 = vpop.permute.xlu0 %589
        %vm591 = vcmp.lt.s32.totalorder %v362, 1
        %v592 = vsel %vm591, %v588, %v590
        %v593 = vsel %vm591, %v590, %v588
        %s594 = scalar_lea.vmem %s5, 3
        %v595 = vld [vmem:[%s594] ss:$8 sm:$0x3]
        %v597 = vlaneseq
        %v598 = vshrl.u32 %v597, 7
        %v599 = vsub.s32 0, %v598
        %v600 = vrot.slane %v595, %v599
        %v601 = vlaneseq
        %v602 = vshrl.u32 %v601, 7
        %v603 = vsub.s32 1, %v602
        %v604 = vrot.slane %v595, %v603
        %v607 = vmul.f32 %v593, %v600
        %v608 = vmul.f32 %v592, %v604
        %s609 = scalar_lea.vmem %s1, 12
        %v610 = vld [vmem:[%s609] sm:$0xf]
        %v611 = vpack.c.bf16 %v607, %v607
        %v612 = vpack.c.bf16 %v608, %v608
        %v614 = vsel %vm305, %v610, 0
        %v617 = vsel %vm309, %v611, 0
        %v620 = vsel %vm309, %v612, 0
        %622 = vmatprep.subr.bf16.mxu0 %v620
        %623 = vmatpush1.bf16.msra.mxu0 %v617
        %624 = vmatprep.subr.bf16.mxu0 0
        %625 = vmatpush1.bf16.msra.mxu0 0
        %626 = vmatprep.subr.bf16.mxu0 0
        %627 = vmatpush1.bf16.msra.mxu0 0
        %628 = vmatprep.subr.bf16.mxu0 0
        %629 = vmatpush1.bf16.msra.mxu0 0
        %630 = vmatprep.subr.bf16.mxu0 0
        %631 = vmatpush1.bf16.msra.mxu0 0
        %632 = vmatprep.subr.bf16.mxu0 0
        %633 = vmatpush1.bf16.msra.mxu0 0
        %634 = vmatprep.subr.bf16.mxu0 0
        %635 = vmatpush1.bf16.msra.mxu0 0
        %636 = vmatprep.subr.bf16.mxu0 0
        %637 = vmatpush1.bf16.msra.mxu0 0
        %638 = vmatprep.subr.bf16.mxu0 0
        %639 = vmatpush1.bf16.msra.mxu0 0
        %640 = vmatprep.subr.bf16.mxu0 0
        %641 = vmatpush1.bf16.msra.mxu0 0
        %642 = vmatprep.subr.bf16.mxu0 0
        %643 = vmatpush1.bf16.msra.mxu0 0
        %644 = vmatprep.subr.bf16.mxu0 0
        %645 = vmatpush1.bf16.msra.mxu0 0
        %646 = vmatprep.subr.bf16.mxu0 0
        %647 = vmatpush1.bf16.msra.mxu0 0
        %648 = vmatprep.subr.bf16.mxu0 0
        %649 = vmatpush1.bf16.msra.mxu0 0
        %650 = vmatprep.subr.bf16.mxu0 0
        %651 = vmatpush1.bf16.msra.mxu0 0
        %652 = vmatprep.subr.bf16.mxu0 0
        %653 = vmatpush1.bf16.msra.mxu0 0
        %654 = vmatprep.mubr.bf16.mxu0 0
        %655 = vmatmul.mubr.bf16.gmra.mrb[0].mxu0 %v614
        %v656 = vpop.f32.mrb[0].mxu0
        %v657 = vadd.f32 0.0, %v656
        %v658 = vpop.f32.mrb[0].mxu0
        %v659 = vadd.f32 0.0, %v658
        %v660 = vpop.f32.mrb[0].mxu0
        %v661 = vpop.f32.mrb[0].mxu0
        %662 = vdwg.mxu0
        %v663 = vadd.f32 %v585, %v657
        %v664 = vadd.f32 %v586, %v659
        %s665 = scalar_lea.vmem %s5, 4
        %v666 = vld [vmem:[%s665] ss:$8 sm:$0x3]
        %v668 = vlaneseq
        %v669 = vshrl.u32 %v668, 7
        %v670 = vsub.s32 0, %v669
        %v671 = vrot.slane %v666, %v670
        %v672 = vlaneseq
        %v673 = vshrl.u32 %v672, 7
        %v674 = vsub.s32 1, %v673
        %v675 = vrot.slane %v666, %v674
        %v676 = vcombine.low %v671, %v675
        %v678 = vmul.f32 %v292, %v676
        %s679 = scalar_lea.vmem %s1, 16
        %v680 = vld [vmem:[%s679] sm:$0xf]
        %v682 = vcombine.high %v678, %v678
        %v684 = vpack.c.bf16 %v678, %v678
        %v685 = vpack.c.bf16 %v682, %v682
        %v687 = vsel %vm305, %v680, 0
        %v690 = vsel %vm309, %v684, 0
        %v693 = vsel %vm309, %v685, 0
        %695 = vmatprep.subr.bf16.mxu0 %v693
        %696 = vmatpush1.bf16.msra.mxu0 %v690
        %697 = vmatprep.subr.bf16.mxu0 0
        %698 = vmatpush1.bf16.msra.mxu0 0
        %699 = vmatprep.subr.bf16.mxu0 0
        %700 = vmatpush1.bf16.msra.mxu0 0
        %701 = vmatprep.subr.bf16.mxu0 0
        %702 = vmatpush1.bf16.msra.mxu0 0
        %703 = vmatprep.subr.bf16.mxu0 0
        %704 = vmatpush1.bf16.msra.mxu0 0
        %705 = vmatprep.subr.bf16.mxu0 0
        %706 = vmatpush1.bf16.msra.mxu0 0
        %707 = vmatprep.subr.bf16.mxu0 0
        %708 = vmatpush1.bf16.msra.mxu0 0
        %709 = vmatprep.subr.bf16.mxu0 0
        %710 = vmatpush1.bf16.msra.mxu0 0
        %711 = vmatprep.subr.bf16.mxu0 0
        %712 = vmatpush1.bf16.msra.mxu0 0
        %713 = vmatprep.subr.bf16.mxu0 0
        %714 = vmatpush1.bf16.msra.mxu0 0
        %715 = vmatprep.subr.bf16.mxu0 0
        %716 = vmatpush1.bf16.msra.mxu0 0
        %717 = vmatprep.subr.bf16.mxu0 0
        %718 = vmatpush1.bf16.msra.mxu0 0
        %719 = vmatprep.subr.bf16.mxu0 0
        %720 = vmatpush1.bf16.msra.mxu0 0
        %721 = vmatprep.subr.bf16.mxu0 0
        %722 = vmatpush1.bf16.msra.mxu0 0
        %723 = vmatprep.subr.bf16.mxu0 0
        %724 = vmatpush1.bf16.msra.mxu0 0
        %725 = vmatprep.subr.bf16.mxu0 0
        %726 = vmatpush1.bf16.msra.mxu0 0
        %727 = vmatprep.mubr.bf16.mxu0 0
        %728 = vmatmul.mubr.bf16.gmra.mrb[0].mxu0 %v687
        %v729 = vpop.f32.mrb[0].mxu0
        %v730 = vadd.f32 0.0, %v729
        %v731 = vpop.f32.mrb[0].mxu0
        %v732 = vadd.f32 0.0, %v731
        %v733 = vpop.f32.mrb[0].mxu0
        %v734 = vpop.f32.mrb[0].mxu0
        %735 = vdwg.mxu0
        %v736 = vadd.f32 %v663, %v730
        %v737 = vadd.f32 %v664, %v732
        %738 = vrot.lane.b32.xlu0 %v292, 127
        %v739 = vpop.permute.xlu0 %738
        %740 = vrot.lane.b32.xlu0 %v295, 127
        %v741 = vpop.permute.xlu0 %740
        %vm742 = vcmp.lt.s32.totalorder %v362, 127
        %v743 = vsel %vm742, %v739, %v741
        %v744 = vsel %vm742, %v741, %v739
        %s745 = scalar_lea.vmem %s5, 5
        %v746 = vld [vmem:[%s745] ss:$8 sm:$0x3]
        %v748 = vlaneseq
        %v749 = vshrl.u32 %v748, 7
        %v750 = vsub.s32 0, %v749
        %v751 = vrot.slane %v746, %v750
        %v752 = vlaneseq
        %v753 = vshrl.u32 %v752, 7
        %v754 = vsub.s32 1, %v753
        %v755 = vrot.slane %v746, %v754
        %v758 = vmul.f32 %v743, %v751
        %v759 = vmul.f32 %v744, %v755
        %s760 = scalar_lea.vmem %s1, 20
        %v761 = vld [vmem:[%s760] sm:$0xf]
        %v762 = vpack.c.bf16 %v758, %v758
        %v763 = vpack.c.bf16 %v759, %v759
        %v765 = vsel %vm305, %v761, 0
        %v768 = vsel %vm309, %v762, 0
        %v771 = vsel %vm309, %v763, 0
        %773 = vmatprep.subr.bf16.mxu0 %v771
        %774 = vmatpush1.bf16.msra.mxu0 %v768
        %775 = vmatprep.subr.bf16.mxu0 0
        %776 = vmatpush1.bf16.msra.mxu0 0
        %777 = vmatprep.subr.bf16.mxu0 0
        %778 = vmatpush1.bf16.msra.mxu0 0
        %779 = vmatprep.subr.bf16.mxu0 0
        %780 = vmatpush1.bf16.msra.mxu0 0
        %781 = vmatprep.subr.bf16.mxu0 0
        %782 = vmatpush1.bf16.msra.mxu0 0
        %783 = vmatprep.subr.bf16.mxu0 0
        %784 = vmatpush1.bf16.msra.mxu0 0
        %785 = vmatprep.subr.bf16.mxu0 0
        %786 = vmatpush1.bf16.msra.mxu0 0
        %787 = vmatprep.subr.bf16.mxu0 0
        %788 = vmatpush1.bf16.msra.mxu0 0
        %789 = vmatprep.subr.bf16.mxu0 0
        %790 = vmatpush1.bf16.msra.mxu0 0
        %791 = vmatprep.subr.bf16.mxu0 0
        %792 = vmatpush1.bf16.msra.mxu0 0
        %793 = vmatprep.subr.bf16.mxu0 0
        %794 = vmatpush1.bf16.msra.mxu0 0
        %795 = vmatprep.subr.bf16.mxu0 0
        %796 = vmatpush1.bf16.msra.mxu0 0
        %797 = vmatprep.subr.bf16.mxu0 0
        %798 = vmatpush1.bf16.msra.mxu0 0
        %799 = vmatprep.subr.bf16.mxu0 0
        %800 = vmatpush1.bf16.msra.mxu0 0
        %801 = vmatprep.subr.bf16.mxu0 0
        %802 = vmatpush1.bf16.msra.mxu0 0
        %803 = vmatprep.subr.bf16.mxu0 0
        %804 = vmatpush1.bf16.msra.mxu0 0
        %805 = vmatprep.mubr.bf16.mxu0 0
        %806 = vmatmul.mubr.bf16.gmra.mrb[0].mxu0 %v765
        %v807 = vpop.f32.mrb[0].mxu0
        %v808 = vadd.f32 0.0, %v807
        %v809 = vpop.f32.mrb[0].mxu0
        %v810 = vadd.f32 0.0, %v809
        %v811 = vpop.f32.mrb[0].mxu0
        %v812 = vpop.f32.mrb[0].mxu0
        %813 = vdwg.mxu0
        %v814 = vadd.f32 %v736, %v808
        %v815 = vadd.f32 %v737, %v810
        %816 = vrot.lane.b32.xlu0 %v292, 113
        %v817 = vpop.permute.xlu0 %816
        %818 = vrot.lane.b32.xlu0 %v295, 113
        %v819 = vpop.permute.xlu0 %818
        %vm820 = vcmp.lt.s32.totalorder %v362, 113
        %v821 = vsel %vm820, %v817, %v819
        %v822 = vsel %vm820, %v819, %v817
        %s823 = scalar_lea.vmem %s5, 6
        %v824 = vld [vmem:[%s823] ss:$8 sm:$0x3]
        %v826 = vlaneseq
        %v827 = vshrl.u32 %v826, 7
        %v828 = vsub.s32 0, %v827
        %v829 = vrot.slane %v824, %v828
        %v830 = vlaneseq
        %v831 = vshrl.u32 %v830, 7
        %v832 = vsub.s32 1, %v831
        %v833 = vrot.slane %v824, %v832
        %v836 = vmul.f32 %v821, %v829
        %v837 = vmul.f32 %v822, %v833
        %s838 = scalar_lea.vmem %s1, 24
        %v839 = vld [vmem:[%s838] sm:$0xf]
        %v840 = vpack.c.bf16 %v836, %v836
        %v841 = vpack.c.bf16 %v837, %v837
        %v843 = vsel %vm305, %v839, 0
        %v846 = vsel %vm309, %v840, 0
        %v849 = vsel %vm309, %v841, 0
        %851 = vmatprep.subr.bf16.mxu0 %v849
        %852 = vmatpush1.bf16.msra.mxu0 %v846
        %853 = vmatprep.subr.bf16.mxu0 0
        %854 = vmatpush1.bf16.msra.mxu0 0
        %855 = vmatprep.subr.bf16.mxu0 0
        %856 = vmatpush1.bf16.msra.mxu0 0
        %857 = vmatprep.subr.bf16.mxu0 0
        %858 = vmatpush1.bf16.msra.mxu0 0
        %859 = vmatprep.subr.bf16.mxu0 0
        %860 = vmatpush1.bf16.msra.mxu0 0
        %861 = vmatprep.subr.bf16.mxu0 0
        %862 = vmatpush1.bf16.msra.mxu0 0
        %863 = vmatprep.subr.bf16.mxu0 0
        %864 = vmatpush1.bf16.msra.mxu0 0
        %865 = vmatprep.subr.bf16.mxu0 0
        %866 = vmatpush1.bf16.msra.mxu0 0
        %867 = vmatprep.subr.bf16.mxu0 0
        %868 = vmatpush1.bf16.msra.mxu0 0
        %869 = vmatprep.subr.bf16.mxu0 0
        %870 = vmatpush1.bf16.msra.mxu0 0
        %871 = vmatprep.subr.bf16.mxu0 0
        %872 = vmatpush1.bf16.msra.mxu0 0
        %873 = vmatprep.subr.bf16.mxu0 0
        %874 = vmatpush1.bf16.msra.mxu0 0
        %875 = vmatprep.subr.bf16.mxu0 0
        %876 = vmatpush1.bf16.msra.mxu0 0
        %877 = vmatprep.subr.bf16.mxu0 0
        %878 = vmatpush1.bf16.msra.mxu0 0
        %879 = vmatprep.subr.bf16.mxu0 0
        %880 = vmatpush1.bf16.msra.mxu0 0
        %881 = vmatprep.subr.bf16.mxu0 0
        %882 = vmatpush1.bf16.msra.mxu0 0
        %883 = vmatprep.mubr.bf16.mxu0 0
        %884 = vmatmul.mubr.bf16.gmra.mrb[0].mxu0 %v843
        %v885 = vpop.f32.mrb[0].mxu0
        %v886 = vadd.f32 0.0, %v885
        %v887 = vpop.f32.mrb[0].mxu0
        %v888 = vadd.f32 0.0, %v887
        %v889 = vpop.f32.mrb[0].mxu0
        %v890 = vpop.f32.mrb[0].mxu0
        %891 = vdwg.mxu0
        %v892 = vadd.f32 %v814, %v886
        %v893 = vadd.f32 %v815, %v888
        %894 = vrot.lane.b32.xlu0 %v292, 112
        %v895 = vpop.permute.xlu0 %894
        %896 = vrot.lane.b32.xlu0 %v295, 112
        %v897 = vpop.permute.xlu0 %896
        %vm898 = vcmp.lt.s32.totalorder %v362, 112
        %v899 = vsel %vm898, %v895, %v897
        %v900 = vsel %vm898, %v897, %v895
        %s901 = scalar_lea.vmem %s5, 7
        %v902 = vld [vmem:[%s901] ss:$8 sm:$0x3]
        %v904 = vlaneseq
        %v905 = vshrl.u32 %v904, 7
        %v906 = vsub.s32 0, %v905
        %v907 = vrot.slane %v902, %v906
        %v908 = vlaneseq
        %v909 = vshrl.u32 %v908, 7
        %v910 = vsub.s32 1, %v909
        %v911 = vrot.slane %v902, %v910
        %v914 = vmul.f32 %v899, %v907
        %v915 = vmul.f32 %v900, %v911
        %s916 = scalar_lea.vmem %s1, 28
        %v917 = vld [vmem:[%s916] sm:$0xf]
        %v918 = vpack.c.bf16 %v914, %v914
        %v919 = vpack.c.bf16 %v915, %v915
        %v921 = vsel %vm305, %v917, 0
        %v924 = vsel %vm309, %v918, 0
        %v927 = vsel %vm309, %v919, 0
        %929 = vmatprep.subr.bf16.mxu0 %v927
        %930 = vmatpush1.bf16.msra.mxu0 %v924
        %931 = vmatprep.subr.bf16.mxu0 0
        %932 = vmatpush1.bf16.msra.mxu0 0
        %933 = vmatprep.subr.bf16.mxu0 0
        %934 = vmatpush1.bf16.msra.mxu0 0
        %935 = vmatprep.subr.bf16.mxu0 0
        %936 = vmatpush1.bf16.msra.mxu0 0
        %937 = vmatprep.subr.bf16.mxu0 0
        %938 = vmatpush1.bf16.msra.mxu0 0
        %939 = vmatprep.subr.bf16.mxu0 0
        %940 = vmatpush1.bf16.msra.mxu0 0
        %941 = vmatprep.subr.bf16.mxu0 0
        %942 = vmatpush1.bf16.msra.mxu0 0
        %943 = vmatprep.subr.bf16.mxu0 0
        %944 = vmatpush1.bf16.msra.mxu0 0
        %945 = vmatprep.subr.bf16.mxu0 0
        %946 = vmatpush1.bf16.msra.mxu0 0
        %947 = vmatprep.subr.bf16.mxu0 0
        %948 = vmatpush1.bf16.msra.mxu0 0
        %949 = vmatprep.subr.bf16.mxu0 0
        %950 = vmatpush1.bf16.msra.mxu0 0
        %951 = vmatprep.subr.bf16.mxu0 0
        %952 = vmatpush1.bf16.msra.mxu0 0
        %953 = vmatprep.subr.bf16.mxu0 0
        %954 = vmatpush1.bf16.msra.mxu0 0
        %955 = vmatprep.subr.bf16.mxu0 0
        %956 = vmatpush1.bf16.msra.mxu0 0
        %957 = vmatprep.subr.bf16.mxu0 0
        %958 = vmatpush1.bf16.msra.mxu0 0
        %959 = vmatprep.subr.bf16.mxu0 0
        %960 = vmatpush1.bf16.msra.mxu0 0
        %961 = vmatprep.mubr.bf16.mxu0 0
        %962 = vmatmul.mubr.bf16.gmra.mrb[0].mxu0 %v921
        %v963 = vpop.f32.mrb[0].mxu0
        %v964 = vadd.f32 0.0, %v963
        %v965 = vpop.f32.mrb[0].mxu0
        %v966 = vadd.f32 0.0, %v965
        %v967 = vpop.f32.mrb[0].mxu0
        %v968 = vpop.f32.mrb[0].mxu0
        %969 = vdwg.mxu0
        %v970 = vadd.f32 %v892, %v964
        %v971 = vadd.f32 %v893, %v966
        %972 = vrot.lane.b32.xlu0 %v292, 111
        %v973 = vpop.permute.xlu0 %972
        %974 = vrot.lane.b32.xlu0 %v295, 111
        %v975 = vpop.permute.xlu0 %974
        %vm976 = vcmp.lt.s32.totalorder %v362, 111
        %v977 = vsel %vm976, %v973, %v975
        %v978 = vsel %vm976, %v975, %v973
        %s979 = scalar_lea.vmem %s5, 16
        %v980 = vld [vmem:[%s979] ss:$8 sm:$0x3]
        %v982 = vlaneseq
        %v983 = vshrl.u32 %v982, 7
        %v984 = vsub.s32 0, %v983
        %v985 = vrot.slane %v980, %v984
        %v986 = vlaneseq
        %v987 = vshrl.u32 %v986, 7
        %v988 = vsub.s32 1, %v987
        %v989 = vrot.slane %v980, %v988
        %v992 = vmul.f32 %v977, %v985
        %v993 = vmul.f32 %v978, %v989
        %s994 = scalar_lea.vmem %s1, 32
        %v995 = vld [vmem:[%s994] sm:$0xf]
        %v996 = vpack.c.bf16 %v992, %v992
        %v997 = vpack.c.bf16 %v993, %v993
        %v999 = vsel %vm305, %v995, 0
        %v1002 = vsel %vm309, %v996, 0
        %v1005 = vsel %vm309, %v997, 0
        %1007 = vmatprep.subr.bf16.mxu0 %v1005
        %1008 = vmatpush1.bf16.msra.mxu0 %v1002
        %1009 = vmatprep.subr.bf16.mxu0 0
        %1010 = vmatpush1.bf16.msra.mxu0 0
        %1011 = vmatprep.subr.bf16.mxu0 0
        %1012 = vmatpush1.bf16.msra.mxu0 0
        %1013 = vmatprep.subr.bf16.mxu0 0
        %1014 = vmatpush1.bf16.msra.mxu0 0
        %1015 = vmatprep.subr.bf16.mxu0 0
        %1016 = vmatpush1.bf16.msra.mxu0 0
        %1017 = vmatprep.subr.bf16.mxu0 0
        %1018 = vmatpush1.bf16.msra.mxu0 0
        %1019 = vmatprep.subr.bf16.mxu0 0
        %1020 = vmatpush1.bf16.msra.mxu0 0
        %1021 = vmatprep.subr.bf16.mxu0 0
        %1022 = vmatpush1.bf16.msra.mxu0 0
        %1023 = vmatprep.subr.bf16.mxu0 0
        %1024 = vmatpush1.bf16.msra.mxu0 0
        %1025 = vmatprep.subr.bf16.mxu0 0
        %1026 = vmatpush1.bf16.msra.mxu0 0
        %1027 = vmatprep.subr.bf16.mxu0 0
        %1028 = vmatpush1.bf16.msra.mxu0 0
        %1029 = vmatprep.subr.bf16.mxu0 0
        %1030 = vmatpush1.bf16.msra.mxu0 0
        %1031 = vmatprep.subr.bf16.mxu0 0
        %1032 = vmatpush1.bf16.msra.mxu0 0
        %1033 = vmatprep.subr.bf16.mxu0 0
        %1034 = vmatpush1.bf16.msra.mxu0 0
        %1035 = vmatprep.subr.bf16.mxu0 0
        %1036 = vmatpush1.bf16.msra.mxu0 0
        %1037 = vmatprep.subr.bf16.mxu0 0
        %1038 = vmatpush1.bf16.msra.mxu0 0
        %1039 = vmatprep.mubr.bf16.mxu0 0
        %1040 = vmatmul.mubr.bf16.gmra.mrb[0].mxu0 %v999
        %v1041 = vpop.f32.mrb[0].mxu0
        %v1042 = vadd.f32 0.0, %v1041
        %v1043 = vpop.f32.mrb[0].mxu0
        %v1044 = vadd.f32 0.0, %v1043
        %v1045 = vpop.f32.mrb[0].mxu0
        %v1046 = vpop.f32.mrb[0].mxu0
        %1047 = vdwg.mxu0
        %v1048 = vadd.f32 %v970, %v1042
        %v1049 = vadd.f32 %v971, %v1044
        %s1050 = sld [smem:[#allocation2]]
        %v1051 = vadd.f32 %v1048, %v1049
        %1052 = vadd.xlane.f32.xlu0 %v1051
        %v1053 = vpop.xlane.xlu0 %1052
        %v1054 = vrcp.pop 256.0
        %v1055 = vmul.f32 %v1053, %v1054
        %v1056 = vsub.f32 %v1048, %v1055
        %v1057 = vsub.f32 %v1049, %v1055
        %v1058 = vmul.f32 %v1056, %v1056
        %v1059 = vmul.f32 %v1057, %v1057
        %v1060 = vadd.f32 %v1058, %v1059
        %1061 = vadd.xlane.f32.xlu0 %v1060
        %v1062 = vpop.xlane.xlu0 %1061
        %v1063 = vmul.f32 %v1062, %v1054
        %v1064 = vadd.f32 %v1063, 1e-05
        %v1065 = vrsqrt.pop %v1064
        %v1066 = vmul.f32 %v1056, %v1065
        %v1067 = vmul.f32 %v1057, %v1065
        %vm1068 = vcmp.ge.f32.partialorder %v1066, 0.0
        %vm1069 = vcmp.ge.f32.partialorder %v1067, 0.0
        %v1070 = vstv %s1050
        %v1071 = vmul.f32 %v1070, %v1066
        %v1072 = vmul.f32 %v1070, %v1067
        %v1073 = vsel %vm1068, %v1066, %v1071
        %v1074 = vsel %vm1069, %v1067, %v1072
        %1075 = vrot.lane.b32.xlu0 %v1073, 17
        %v1076 = vpop.permute.xlu0 %1075
        %1077 = vrot.lane.b32.xlu0 %v1074, 17
        %v1078 = vpop.permute.xlu0 %1077
        %v1079 = vsel %vm363, %v1076, %v1078
        %v1080 = vsel %vm363, %v1078, %v1076
        %v1081 = vmul.f32 %v1080, %v371
        %v1082 = vmul.f32 %v1079, %v375
        %v1083 = vld [vmem:[%s2] sm:$0xf]
        %v1084 = vpack.c.bf16 %v1081, %v1081
        %v1085 = vpack.c.bf16 %v1082, %v1082
        %1086 = vrot.lane.b32.xlu0 %v1073, 16
        %v1087 = vpop.permute.xlu0 %1086
        %1088 = vrot.lane.b32.xlu0 %v1074, 16
        %v1089 = vpop.permute.xlu0 %1088
        %v1090 = vsel %vm387, %v1087, %v1089
        %v1091 = vsel %vm387, %v1089, %v1087
        %v1092 = vmul.f32 %v1091, %v396
        %v1093 = vmul.f32 %v1090, %v400
        %s1094 = scalar_lea.vmem %s2, 4
        %v1095 = vld [vmem:[%s1094] sm:$0xf]
        %v1096 = vpack.c.bf16 %v1092, %v1092
        %v1097 = vpack.c.bf16 %v1093, %v1093
        %vm1098 = vcmask 64512
        %v1100 = vsel %vm1098, %v1095, 0
        %vm1102 = vcmask 1043456
        %v1104 = vsel %vm1102, %v1096, 0
        %v1107 = vsel %vm1102, %v1097, 0
        %1109 = vmatprep.subr.bf16.mxu0 %v1107
        %1110 = vmatpush1.bf16.msra.mxu0 %v1104
        %1111 = vmatprep.subr.bf16.mxu0 0
        %1112 = vmatpush1.bf16.msra.mxu0 0
        %1113 = vmatprep.subr.bf16.mxu0 0
        %1114 = vmatpush1.bf16.msra.mxu0 0
        %1115 = vmatprep.subr.bf16.mxu0 0
        %1116 = vmatpush1.bf16.msra.mxu0 0
        %1117 = vmatprep.subr.bf16.mxu0 0
        %1118 = vmatpush1.bf16.msra.mxu0 0
        %1119 = vmatprep.subr.bf16.mxu0 0
        %1120 = vmatpush1.bf16.msra.mxu0 0
        %1121 = vmatprep.subr.bf16.mxu0 0
        %1122 = vmatpush1.bf16.msra.mxu0 0
        %1123 = vmatprep.subr.bf16.mxu0 0
        %1124 = vmatpush1.bf16.msra.mxu0 0
        %1125 = vmatprep.subr.bf16.mxu0 0
        %1126 = vmatpush1.bf16.msra.mxu0 0
        %1127 = vmatprep.subr.bf16.mxu0 0
        %1128 = vmatpush1.bf16.msra.mxu0 0
        %1129 = vmatprep.subr.bf16.mxu0 0
        %1130 = vmatpush1.bf16.msra.mxu0 0
        %1131 = vmatprep.subr.bf16.mxu0 0
        %1132 = vmatpush1.bf16.msra.mxu0 0
        %1133 = vmatprep.subr.bf16.mxu0 0
        %1134 = vmatpush1.bf16.msra.mxu0 0
        %1135 = vmatprep.subr.bf16.mxu0 0
        %1136 = vmatpush1.bf16.msra.mxu0 0
        %1137 = vmatprep.subr.bf16.mxu0 0
        %1138 = vmatpush1.bf16.msra.mxu0 0
        %1139 = vmatprep.subr.bf16.mxu0 0
        %1140 = vmatpush1.bf16.msra.mxu0 0
        %1141 = vmatprep.mubr.bf16.mxu0 0
        %1142 = vmatmul.mubr.bf16.gmra.mrb[0].mxu0 %v1100
        %v1143 = vpop.f32.mrb[0].mxu0
        %v1144 = vadd.f32 0.0, %v1143
        %v1145 = vpop.f32.mrb[0].mxu0
        %v1146 = vadd.f32 0.0, %v1145
        %v1147 = vpop.f32.mrb[0].mxu0
        %v1148 = vpop.f32.mrb[0].mxu0
        %1149 = vdwg.mxu0
        %v1151 = vsel %vm1098, %v1083, 0
        %v1154 = vsel %vm1102, %v1084, 0
        %v1157 = vsel %vm1102, %v1085, 0
        %1159 = vmatprep.subr.bf16.mxu0 %v1157
        %1160 = vmatpush1.bf16.msra.mxu0 %v1154
        %1161 = vmatprep.subr.bf16.mxu0 0
        %1162 = vmatpush1.bf16.msra.mxu0 0
        %1163 = vmatprep.subr.bf16.mxu0 0
        %1164 = vmatpush1.bf16.msra.mxu0 0
        %1165 = vmatprep.subr.bf16.mxu0 0
        %1166 = vmatpush1.bf16.msra.mxu0 0
        %1167 = vmatprep.subr.bf16.mxu0 0
        %1168 = vmatpush1.bf16.msra.mxu0 0
        %1169 = vmatprep.subr.bf16.mxu0 0
        %1170 = vmatpush1.bf16.msra.mxu0 0
        %1171 = vmatprep.subr.bf16.mxu0 0
        %1172 = vmatpush1.bf16.msra.mxu0 0
        %1173 = vmatprep.subr.bf16.mxu0 0
        %1174 = vmatpush1.bf16.msra.mxu0 0
        %1175 = vmatprep.subr.bf16.mxu0 0
        %1176 = vmatpush1.bf16.msra.mxu0 0
        %1177 = vmatprep.subr.bf16.mxu0 0
        %1178 = vmatpush1.bf16.msra.mxu0 0
        %1179 = vmatprep.subr.bf16.mxu0 0
        %1180 = vmatpush1.bf16.msra.mxu0 0
        %1181 = vmatprep.subr.bf16.mxu0 0
        %1182 = vmatpush1.bf16.msra.mxu0 0
        %1183 = vmatprep.subr.bf16.mxu0 0
        %1184 = vmatpush1.bf16.msra.mxu0 0
        %1185 = vmatprep.subr.bf16.mxu0 0
        %1186 = vmatpush1.bf16.msra.mxu0 0
        %1187 = vmatprep.subr.bf16.mxu0 0
        %1188 = vmatpush1.bf16.msra.mxu0 0
        %1189 = vmatprep.subr.bf16.mxu0 0
        %1190 = vmatpush1.bf16.msra.mxu0 0
        %1191 = vmatprep.mubr.bf16.mxu0 0
        %1192 = vmatmul.mubr.bf16.gmra.mrb[0].mxu0 %v1151
        %v1193 = vpop.f32.mrb[0].mxu0
        %v1194 = vadd.f32 %v1144, %v1193
        %v1195 = vpop.f32.mrb[0].mxu0
        %v1196 = vadd.f32 %v1146, %v1195
        %v1197 = vpop.f32.mrb[0].mxu0
        %v1198 = vpop.f32.mrb[0].mxu0
        %1199 = vdwg.mxu0
        %1200 = vrot.lane.b32.xlu0 %v1073, 15
        %v1201 = vpop.permute.xlu0 %1200
        %1202 = vrot.lane.b32.xlu0 %v1074, 15
        %v1203 = vpop.permute.xlu0 %1202
        %v1204 = vsel %vm513, %v1201, %v1203
        %v1205 = vsel %vm513, %v1203, %v1201
        %v1206 = vmul.f32 %v1205, %v522
        %v1207 = vmul.f32 %v1204, %v526
        %s1208 = scalar_lea.vmem %s2, 8
        %v1209 = vld [vmem:[%s1208] sm:$0xf]
        %v1210 = vpack.c.bf16 %v1206, %v1206
        %v1211 = vpack.c.bf16 %v1207, %v1207
        %v1213 = vsel %vm1098, %v1209, 0
        %v1216 = vsel %vm1102, %v1210, 0
        %v1219 = vsel %vm1102, %v1211, 0
        %1221 = vmatprep.subr.bf16.mxu0 %v1219
        %1222 = vmatpush1.bf16.msra.mxu0 %v1216
        %1223 = vmatprep.subr.bf16.mxu0 0
        %1224 = vmatpush1.bf16.msra.mxu0 0
        %1225 = vmatprep.subr.bf16.mxu0 0
        %1226 = vmatpush1.bf16.msra.mxu0 0
        %1227 = vmatprep.subr.bf16.mxu0 0
        %1228 = vmatpush1.bf16.msra.mxu0 0
        %1229 = vmatprep.subr.bf16.mxu0 0
        %1230 = vmatpush1.bf16.msra.mxu0 0
        %1231 = vmatprep.subr.bf16.mxu0 0
        %1232 = vmatpush1.bf16.msra.mxu0 0
        %1233 = vmatprep.subr.bf16.mxu0 0
        %1234 = vmatpush1.bf16.msra.mxu0 0
        %1235 = vmatprep.subr.bf16.mxu0 0
        %1236 = vmatpush1.bf16.msra.mxu0 0
        %1237 = vmatprep.subr.bf16.mxu0 0
        %1238 = vmatpush1.bf16.msra.mxu0 0
        %1239 = vmatprep.subr.bf16.mxu0 0
        %1240 = vmatpush1.bf16.msra.mxu0 0
        %1241 = vmatprep.subr.bf16.mxu0 0
        %1242 = vmatpush1.bf16.msra.mxu0 0
        %1243 = vmatprep.subr.bf16.mxu0 0
        %1244 = vmatpush1.bf16.msra.mxu0 0
        %1245 = vmatprep.subr.bf16.mxu0 0
        %1246 = vmatpush1.bf16.msra.mxu0 0
        %1247 = vmatprep.subr.bf16.mxu0 0
        %1248 = vmatpush1.bf16.msra.mxu0 0
        %1249 = vmatprep.subr.bf16.mxu0 0
        %1250 = vmatpush1.bf16.msra.mxu0 0
        %1251 = vmatprep.subr.bf16.mxu0 0
        %1252 = vmatpush1.bf16.msra.mxu0 0
        %1253 = vmatprep.mubr.bf16.mxu0 0
        %1254 = vmatmul.mubr.bf16.gmra.mrb[0].mxu0 %v1213
        %v1255 = vpop.f32.mrb[0].mxu0
        %v1256 = vadd.f32 0.0, %v1255
        %v1257 = vpop.f32.mrb[0].mxu0
        %v1258 = vadd.f32 0.0, %v1257
        %v1259 = vpop.f32.mrb[0].mxu0
        %v1260 = vpop.f32.mrb[0].mxu0
        %1261 = vdwg.mxu0
        %v1262 = vadd.f32 %v1194, %v1256
        %v1263 = vadd.f32 %v1196, %v1258
        %1264 = vrot.lane.b32.xlu0 %v1073, 1
        %v1265 = vpop.permute.xlu0 %1264
        %1266 = vrot.lane.b32.xlu0 %v1074, 1
        %v1267 = vpop.permute.xlu0 %1266
        %v1268 = vsel %vm591, %v1265, %v1267
        %v1269 = vsel %vm591, %v1267, %v1265
        %v1270 = vmul.f32 %v1269, %v600
        %v1271 = vmul.f32 %v1268, %v604
        %s1272 = scalar_lea.vmem %s2, 12
        %v1273 = vld [vmem:[%s1272] sm:$0xf]
        %v1274 = vpack.c.bf16 %v1270, %v1270
        %v1275 = vpack.c.bf16 %v1271, %v1271
        %v1277 = vsel %vm1098, %v1273, 0
        %v1280 = vsel %vm1102, %v1274, 0
        %v1283 = vsel %vm1102, %v1275, 0
        %1285 = vmatprep.subr.bf16.mxu0 %v1283
        %1286 = vmatpush1.bf16.msra.mxu0 %v1280
        %1287 = vmatprep.subr.bf16.mxu0 0
        %1288 = vmatpush1.bf16.msra.mxu0 0
        %1289 = vmatprep.subr.bf16.mxu0 0
        %1290 = vmatpush1.bf16.msra.mxu0 0
        %1291 = vmatprep.subr.bf16.mxu0 0
        %1292 = vmatpush1.bf16.msra.mxu0 0
        %1293 = vmatprep.subr.bf16.mxu0 0
        %1294 = vmatpush1.bf16.msra.mxu0 0
        %1295 = vmatprep.subr.bf16.mxu0 0
        %1296 = vmatpush1.bf16.msra.mxu0 0
        %1297 = vmatprep.subr.bf16.mxu0 0
        %1298 = vmatpush1.bf16.msra.mxu0 0
        %1299 = vmatprep.subr.bf16.mxu0 0
        %1300 = vmatpush1.bf16.msra.mxu0 0
        %1301 = vmatprep.subr.bf16.mxu0 0
        %1302 = vmatpush1.bf16.msra.mxu0 0
        %1303 = vmatprep.subr.bf16.mxu0 0
        %1304 = vmatpush1.bf16.msra.mxu0 0
        %1305 = vmatprep.subr.bf16.mxu0 0
        %1306 = vmatpush1.bf16.msra.mxu0 0
        %1307 = vmatprep.subr.bf16.mxu0 0
        %1308 = vmatpush1.bf16.msra.mxu0 0
        %1309 = vmatprep.subr.bf16.mxu0 0
        %1310 = vmatpush1.bf16.msra.mxu0 0
        %1311 = vmatprep.subr.bf16.mxu0 0
        %1312 = vmatpush1.bf16.msra.mxu0 0
        %1313 = vmatprep.subr.bf16.mxu0 0
        %1314 = vmatpush1.bf16.msra.mxu0 0
        %1315 = vmatprep.subr.bf16.mxu0 0
        %1316 = vmatpush1.bf16.msra.mxu0 0
        %1317 = vmatprep.mubr.bf16.mxu0 0
        %1318 = vmatmul.mubr.bf16.gmra.mrb[0].mxu0 %v1277
        %v1319 = vpop.f32.mrb[0].mxu0
        %v1320 = vadd.f32 0.0, %v1319
        %v1321 = vpop.f32.mrb[0].mxu0
        %v1322 = vadd.f32 0.0, %v1321
        %v1323 = vpop.f32.mrb[0].mxu0
        %v1324 = vpop.f32.mrb[0].mxu0
        %1325 = vdwg.mxu0
        %v1326 = vadd.f32 %v1262, %v1320
        %v1327 = vadd.f32 %v1263, %v1322
        %v1330 = vmul.f32 %v1073, %v671
        %v1331 = vmul.f32 %v1074, %v675
        %s1332 = scalar_lea.vmem %s2, 16
        %v1333 = vld [vmem:[%s1332] sm:$0xf]
        %v1334 = vpack.c.bf16 %v1330, %v1330
        %v1335 = vpack.c.bf16 %v1331, %v1331
        %v1337 = vsel %vm1098, %v1333, 0
        %v1340 = vsel %vm1102, %v1334, 0
        %v1343 = vsel %vm1102, %v1335, 0
        %1345 = vmatprep.subr.bf16.mxu0 %v1343
        %1346 = vmatpush1.bf16.msra.mxu0 %v1340
        %1347 = vmatprep.subr.bf16.mxu0 0
        %1348 = vmatpush1.bf16.msra.mxu0 0
        %1349 = vmatprep.subr.bf16.mxu0 0
        %1350 = vmatpush1.bf16.msra.mxu0 0
        %1351 = vmatprep.subr.bf16.mxu0 0
        %1352 = vmatpush1.bf16.msra.mxu0 0
        %1353 = vmatprep.subr.bf16.mxu0 0
        %1354 = vmatpush1.bf16.msra.mxu0 0
        %1355 = vmatprep.subr.bf16.mxu0 0
        %1356 = vmatpush1.bf16.msra.mxu0 0
        %1357 = vmatprep.subr.bf16.mxu0 0
        %1358 = vmatpush1.bf16.msra.mxu0 0
        %1359 = vmatprep.subr.bf16.mxu0 0
        %1360 = vmatpush1.bf16.msra.mxu0 0
        %1361 = vmatprep.subr.bf16.mxu0 0
        %1362 = vmatpush1.bf16.msra.mxu0 0
        %1363 = vmatprep.subr.bf16.mxu0 0
        %1364 = vmatpush1.bf16.msra.mxu0 0
        %1365 = vmatprep.subr.bf16.mxu0 0
        %1366 = vmatpush1.bf16.msra.mxu0 0
        %1367 = vmatprep.subr.bf16.mxu0 0
        %1368 = vmatpush1.bf16.msra.mxu0 0
        %1369 = vmatprep.subr.bf16.mxu0 0
        %1370 = vmatpush1.bf16.msra.mxu0 0
        %1371 = vmatprep.subr.bf16.mxu0 0
        %1372 = vmatpush1.bf16.msra.mxu0 0
        %1373 = vmatprep.subr.bf16.mxu0 0
        %1374 = vmatpush1.bf16.msra.mxu0 0
        %1375 = vmatprep.subr.bf16.mxu0 0
        %1376 = vmatpush1.bf16.msra.mxu0 0
        %1377 = vmatprep.mubr.bf16.mxu0 0
        %1378 = vmatmul.mubr.bf16.gmra.mrb[0].mxu0 %v1337
        %v1379 = vpop.f32.mrb[0].mxu0
        %v1380 = vadd.f32 0.0, %v1379
        %v1381 = vpop.f32.mrb[0].mxu0
        %v1382 = vadd.f32 0.0, %v1381
        %v1383 = vpop.f32.mrb[0].mxu0
        %v1384 = vpop.f32.mrb[0].mxu0
        %1385 = vdwg.mxu0
        %v1386 = vadd.f32 %v1326, %v1380
        %v1387 = vadd.f32 %v1327, %v1382
        %1388 = vrot.lane.b32.xlu0 %v1073, 127
        %v1389 = vpop.permute.xlu0 %1388
        %1390 = vrot.lane.b32.xlu0 %v1074, 127
        %v1391 = vpop.permute.xlu0 %1390
        %v1392 = vsel %vm742, %v1389, %v1391
        %v1393 = vsel %vm742, %v1391, %v1389
        %v1394 = vmul.f32 %v1392, %v751
        %v1395 = vmul.f32 %v1393, %v755
        %s1396 = scalar_lea.vmem %s2, 20
        %v1397 = vld [vmem:[%s1396] sm:$0xf]
        %v1398 = vpack.c.bf16 %v1394, %v1394
        %v1399 = vpack.c.bf16 %v1395, %v1395
        %v1401 = vsel %vm1098, %v1397, 0
        %v1404 = vsel %vm1102, %v1398, 0
        %v1407 = vsel %vm1102, %v1399, 0
        %1409 = vmatprep.subr.bf16.mxu0 %v1407
        %1410 = vmatpush1.bf16.msra.mxu0 %v1404
        %1411 = vmatprep.subr.bf16.mxu0 0
        %1412 = vmatpush1.bf16.msra.mxu0 0
        %1413 = vmatprep.subr.bf16.mxu0 0
        %1414 = vmatpush1.bf16.msra.mxu0 0
        %1415 = vmatprep.subr.bf16.mxu0 0
        %1416 = vmatpush1.bf16.msra.mxu0 0
        %1417 = vmatprep.subr.bf16.mxu0 0
        %1418 = vmatpush1.bf16.msra.mxu0 0
        %1419 = vmatprep.subr.bf16.mxu0 0
        %1420 = vmatpush1.bf16.msra.mxu0 0
        %1421 = vmatprep.subr.bf16.mxu0 0
        %1422 = vmatpush1.bf16.msra.mxu0 0
        %1423 = vmatprep.subr.bf16.mxu0 0
        %1424 = vmatpush1.bf16.msra.mxu0 0
        %1425 = vmatprep.subr.bf16.mxu0 0
        %1426 = vmatpush1.bf16.msra.mxu0 0
        %1427 = vmatprep.subr.bf16.mxu0 0
        %1428 = vmatpush1.bf16.msra.mxu0 0
        %1429 = vmatprep.subr.bf16.mxu0 0
        %1430 = vmatpush1.bf16.msra.mxu0 0
        %1431 = vmatprep.subr.bf16.mxu0 0
        %1432 = vmatpush1.bf16.msra.mxu0 0
        %1433 = vmatprep.subr.bf16.mxu0 0
        %1434 = vmatpush1.bf16.msra.mxu0 0
        %1435 = vmatprep.subr.bf16.mxu0 0
        %1436 = vmatpush1.bf16.msra.mxu0 0
        %1437 = vmatprep.subr.bf16.mxu0 0
        %1438 = vmatpush1.bf16.msra.mxu0 0
        %1439 = vmatprep.subr.bf16.mxu0 0
        %1440 = vmatpush1.bf16.msra.mxu0 0
        %1441 = vmatprep.mubr.bf16.mxu0 0
        %1442 = vmatmul.mubr.bf16.gmra.mrb[0].mxu0 %v1401
        %v1443 = vpop.f32.mrb[0].mxu0
        %v1444 = vadd.f32 0.0, %v1443
        %v1445 = vpop.f32.mrb[0].mxu0
        %v1446 = vadd.f32 0.0, %v1445
        %v1447 = vpop.f32.mrb[0].mxu0
        %v1448 = vpop.f32.mrb[0].mxu0
        %1449 = vdwg.mxu0
        %v1450 = vadd.f32 %v1386, %v1444
        %v1451 = vadd.f32 %v1387, %v1446
        %1452 = vrot.lane.b32.xlu0 %v1073, 113
        %v1453 = vpop.permute.xlu0 %1452
        %1454 = vrot.lane.b32.xlu0 %v1074, 113
        %v1455 = vpop.permute.xlu0 %1454
        %v1456 = vsel %vm820, %v1453, %v1455
        %v1457 = vsel %vm820, %v1455, %v1453
        %v1458 = vmul.f32 %v1456, %v829
        %v1459 = vmul.f32 %v1457, %v833
        %s1460 = scalar_lea.vmem %s2, 24
        %v1461 = vld [vmem:[%s1460] sm:$0xf]
        %v1462 = vpack.c.bf16 %v1458, %v1458
        %v1463 = vpack.c.bf16 %v1459, %v1459
        %v1465 = vsel %vm1098, %v1461, 0
        %v1468 = vsel %vm1102, %v1462, 0
        %v1471 = vsel %vm1102, %v1463, 0
        %1473 = vmatprep.subr.bf16.mxu0 %v1471
        %1474 = vmatpush1.bf16.msra.mxu0 %v1468
        %1475 = vmatprep.subr.bf16.mxu0 0
        %1476 = vmatpush1.bf16.msra.mxu0 0
        %1477 = vmatprep.subr.bf16.mxu0 0
        %1478 = vmatpush1.bf16.msra.mxu0 0
        %1479 = vmatprep.subr.bf16.mxu0 0
        %1480 = vmatpush1.bf16.msra.mxu0 0
        %1481 = vmatprep.subr.bf16.mxu0 0
        %1482 = vmatpush1.bf16.msra.mxu0 0
        %1483 = vmatprep.subr.bf16.mxu0 0
        %1484 = vmatpush1.bf16.msra.mxu0 0
        %1485 = vmatprep.subr.bf16.mxu0 0
        %1486 = vmatpush1.bf16.msra.mxu0 0
        %1487 = vmatprep.subr.bf16.mxu0 0
        %1488 = vmatpush1.bf16.msra.mxu0 0
        %1489 = vmatprep.subr.bf16.mxu0 0
        %1490 = vmatpush1.bf16.msra.mxu0 0
        %1491 = vmatprep.subr.bf16.mxu0 0
        %1492 = vmatpush1.bf16.msra.mxu0 0
        %1493 = vmatprep.subr.bf16.mxu0 0
        %1494 = vmatpush1.bf16.msra.mxu0 0
        %1495 = vmatprep.subr.bf16.mxu0 0
        %1496 = vmatpush1.bf16.msra.mxu0 0
        %1497 = vmatprep.subr.bf16.mxu0 0
        %1498 = vmatpush1.bf16.msra.mxu0 0
        %1499 = vmatprep.subr.bf16.mxu0 0
        %1500 = vmatpush1.bf16.msra.mxu0 0
        %1501 = vmatprep.subr.bf16.mxu0 0
        %1502 = vmatpush1.bf16.msra.mxu0 0
        %1503 = vmatprep.subr.bf16.mxu0 0
        %1504 = vmatpush1.bf16.msra.mxu0 0
        %1505 = vmatprep.mubr.bf16.mxu0 0
        %1506 = vmatmul.mubr.bf16.gmra.mrb[0].mxu0 %v1465
        %v1507 = vpop.f32.mrb[0].mxu0
        %v1508 = vadd.f32 0.0, %v1507
        %v1509 = vpop.f32.mrb[0].mxu0
        %v1510 = vadd.f32 0.0, %v1509
        %v1511 = vpop.f32.mrb[0].mxu0
        %v1512 = vpop.f32.mrb[0].mxu0
        %1513 = vdwg.mxu0
        %v1514 = vadd.f32 %v1450, %v1508
        %v1515 = vadd.f32 %v1451, %v1510
        %1516 = vrot.lane.b32.xlu0 %v1073, 112
        %v1517 = vpop.permute.xlu0 %1516
        %1518 = vrot.lane.b32.xlu0 %v1074, 112
        %v1519 = vpop.permute.xlu0 %1518
        %v1520 = vsel %vm898, %v1517, %v1519
        %v1521 = vsel %vm898, %v1519, %v1517
        %v1522 = vmul.f32 %v1520, %v907
        %v1523 = vmul.f32 %v1521, %v911
        %s1524 = scalar_lea.vmem %s2, 28
        %v1525 = vld [vmem:[%s1524] sm:$0xf]
        %v1526 = vpack.c.bf16 %v1522, %v1522
        %v1527 = vpack.c.bf16 %v1523, %v1523
        %v1529 = vsel %vm1098, %v1525, 0
        %v1532 = vsel %vm1102, %v1526, 0
        %v1535 = vsel %vm1102, %v1527, 0
        %1537 = vmatprep.subr.bf16.mxu0 %v1535
        %1538 = vmatpush1.bf16.msra.mxu0 %v1532
        %1539 = vmatprep.subr.bf16.mxu0 0
        %1540 = vmatpush1.bf16.msra.mxu0 0
        %1541 = vmatprep.subr.bf16.mxu0 0
        %1542 = vmatpush1.bf16.msra.mxu0 0
        %1543 = vmatprep.subr.bf16.mxu0 0
        %1544 = vmatpush1.bf16.msra.mxu0 0
        %1545 = vmatprep.subr.bf16.mxu0 0
        %1546 = vmatpush1.bf16.msra.mxu0 0
        %1547 = vmatprep.subr.bf16.mxu0 0
        %1548 = vmatpush1.bf16.msra.mxu0 0
        %1549 = vmatprep.subr.bf16.mxu0 0
        %1550 = vmatpush1.bf16.msra.mxu0 0
        %1551 = vmatprep.subr.bf16.mxu0 0
        %1552 = vmatpush1.bf16.msra.mxu0 0
        %1553 = vmatprep.subr.bf16.mxu0 0
        %1554 = vmatpush1.bf16.msra.mxu0 0
        %1555 = vmatprep.subr.bf16.mxu0 0
        %1556 = vmatpush1.bf16.msra.mxu0 0
        %1557 = vmatprep.subr.bf16.mxu0 0
        %1558 = vmatpush1.bf16.msra.mxu0 0
        %1559 = vmatprep.subr.bf16.mxu0 0
        %1560 = vmatpush1.bf16.msra.mxu0 0
        %1561 = vmatprep.subr.bf16.mxu0 0
        %1562 = vmatpush1.bf16.msra.mxu0 0
        %1563 = vmatprep.subr.bf16.mxu0 0
        %1564 = vmatpush1.bf16.msra.mxu0 0
        %1565 = vmatprep.subr.bf16.mxu0 0
        %1566 = vmatpush1.bf16.msra.mxu0 0
        %1567 = vmatprep.subr.bf16.mxu0 0
        %1568 = vmatpush1.bf16.msra.mxu0 0
        %1569 = vmatprep.mubr.bf16.mxu0 0
        %1570 = vmatmul.mubr.bf16.gmra.mrb[0].mxu0 %v1529
        %v1571 = vpop.f32.mrb[0].mxu0
        %v1572 = vadd.f32 0.0, %v1571
        %v1573 = vpop.f32.mrb[0].mxu0
        %v1574 = vadd.f32 0.0, %v1573
        %v1575 = vpop.f32.mrb[0].mxu0
        %v1576 = vpop.f32.mrb[0].mxu0
        %1577 = vdwg.mxu0
        %v1578 = vadd.f32 %v1514, %v1572
        %v1579 = vadd.f32 %v1515, %v1574
        %1580 = vrot.lane.b32.xlu0 %v1073, 111
        %v1581 = vpop.permute.xlu0 %1580
        %1582 = vrot.lane.b32.xlu0 %v1074, 111
        %v1583 = vpop.permute.xlu0 %1582
        %v1584 = vsel %vm976, %v1581, %v1583
        %v1585 = vsel %vm976, %v1583, %v1581
        %v1586 = vmul.f32 %v1584, %v985
        %v1587 = vmul.f32 %v1585, %v989
        %s1588 = scalar_lea.vmem %s2, 32
        %v1589 = vld [vmem:[%s1588] sm:$0xf]
        %v1590 = vpack.c.bf16 %v1586, %v1586
        %v1591 = vpack.c.bf16 %v1587, %v1587
        %v1593 = vsel %vm1098, %v1589, 0
        %v1596 = vsel %vm1102, %v1590, 0
        %v1599 = vsel %vm1102, %v1591, 0
        %1601 = vmatprep.subr.bf16.mxu0 %v1599
        %1602 = vmatpush1.bf16.msra.mxu0 %v1596
        %1603 = vmatprep.subr.bf16.mxu0 0
        %1604 = vmatpush1.bf16.msra.mxu0 0
        %1605 = vmatprep.subr.bf16.mxu0 0
        %1606 = vmatpush1.bf16.msra.mxu0 0
        %1607 = vmatprep.subr.bf16.mxu0 0
        %1608 = vmatpush1.bf16.msra.mxu0 0
        %1609 = vmatprep.subr.bf16.mxu0 0
        %1610 = vmatpush1.bf16.msra.mxu0 0
        %1611 = vmatprep.subr.bf16.mxu0 0
        %1612 = vmatpush1.bf16.msra.mxu0 0
        %1613 = vmatprep.subr.bf16.mxu0 0
        %1614 = vmatpush1.bf16.msra.mxu0 0
        %1615 = vmatprep.subr.bf16.mxu0 0
        %1616 = vmatpush1.bf16.msra.mxu0 0
        %1617 = vmatprep.subr.bf16.mxu0 0
        %1618 = vmatpush1.bf16.msra.mxu0 0
        %1619 = vmatprep.subr.bf16.mxu0 0
        %1620 = vmatpush1.bf16.msra.mxu0 0
        %1621 = vmatprep.subr.bf16.mxu0 0
        %1622 = vmatpush1.bf16.msra.mxu0 0
        %1623 = vmatprep.subr.bf16.mxu0 0
        %1624 = vmatpush1.bf16.msra.mxu0 0
        %1625 = vmatprep.subr.bf16.mxu0 0
        %1626 = vmatpush1.bf16.msra.mxu0 0
        %1627 = vmatprep.subr.bf16.mxu0 0
        %1628 = vmatpush1.bf16.msra.mxu0 0
        %1629 = vmatprep.subr.bf16.mxu0 0
        %1630 = vmatpush1.bf16.msra.mxu0 0
        %1631 = vmatprep.subr.bf16.mxu0 0
        %1632 = vmatpush1.bf16.msra.mxu0 0
        %1633 = vmatprep.mubr.bf16.mxu0 0
        %1634 = vmatmul.mubr.bf16.gmra.mrb[0].mxu0 %v1593
        %v1635 = vpop.f32.mrb[0].mxu0
        %v1636 = vadd.f32 0.0, %v1635
        %v1637 = vpop.f32.mrb[0].mxu0
        %v1638 = vadd.f32 0.0, %v1637
        %v1639 = vpop.f32.mrb[0].mxu0
        %v1640 = vpop.f32.mrb[0].mxu0
        %1641 = vdwg.mxu0
        %v1642 = vadd.f32 %v1578, %v1636
        %v1643 = vadd.f32 %v1579, %v1638
        %s1644 = sld [smem:[#allocation2 + $0x1]]
        %v1645 = vadd.f32 %v1642, %v1643
        %1646 = vadd.xlane.f32.xlu0 %v1645
        %v1647 = vpop.xlane.xlu0 %1646
        %v1648 = vmul.f32 %v1647, %v1054
        %v1649 = vsub.f32 %v1642, %v1648
        %v1650 = vsub.f32 %v1643, %v1648
        %v1651 = vmul.f32 %v1649, %v1649
        %v1652 = vmul.f32 %v1650, %v1650
        %v1653 = vadd.f32 %v1651, %v1652
        %1654 = vadd.xlane.f32.xlu0 %v1653
        %v1655 = vpop.xlane.xlu0 %1654
        %v1656 = vmul.f32 %v1655, %v1054
        %v1657 = vadd.f32 %v1656, 1e-05
        %v1658 = vrsqrt.pop %v1657
        %v1659 = vmul.f32 %v1649, %v1658
        %v1660 = vmul.f32 %v1650, %v1658
        %vm1661 = vcmp.ge.f32.partialorder %v1659, 0.0
        %vm1662 = vcmp.ge.f32.partialorder %v1660, 0.0
        %v1663 = vstv %s1644
        %v1664 = vmul.f32 %v1663, %v1659
        %v1665 = vmul.f32 %v1663, %v1660
        %v1666 = vsel %vm1661, %v1659, %v1664
        %v1667 = vsel %vm1662, %v1660, %v1665
        %v1668 = vadd.f32 %v1666, %v351
        %v1669 = vadd.f32 %v1667, %v353
        %1670 = vst [vmem:[%s285] sm:$0xff] %v1668
        %1671 = vst [vmem:[%s285 + $0x8] sm:$0xff] %v1669
        %s1672 = sand.u32 %s182, 1
        %s1673 = scalar_lea.sflag [#allocation3], %s1672
        %s1674 = sand.u32 %s182, 1
        %s1675 = smul.addr %s1674, 16
        %s1676 = scalar_lea.vmem [#allocation5], %s1675
        // Predicated region
        $region53: #{tpu_custom_call.1} parent=47 // pred_check
          %p1677 = pneg %p192
        $region54: #{tpu_custom_call.1} parent=47 // pred_check_branch
          %1679 = sbr.rel (%p1677) target = $region56
        $region55: #{tpu_custom_call.1} parent=47 // pred_region
          %s1681 = ssub.s32 256, 256
          %1682 = vsyncadd %s1673, %s1681
          %s1683 = smul.addr %s22, 2
          %s1684 = smul.addr %s1683, 128
          %s1685 = scalar_lea.hbm %s7, %s1684
          %s1687 = sshll.u32 %s1676, 4
          %s1688 = int_to_ptr.vmem [resolvable:$true] %s1687
          %1690 = dma.vmem_to_hbm [thread:$0]  %s1688, 256, %s1685, %s1673
        $region56: #{tpu_custom_call.1} parent=47 // pred_fallthru
          _
      $region48: #{tpu_custom_call.1} parent=5 // pred_fallthru
        _
      %p1691 = scmp.le.s32.totalorder 2, %s17
      // Predicated region
      $region57: #{tpu_custom_call.1} parent=5 // pred_check
        %p1692 = pneg %p1691
      $region58: #{tpu_custom_call.1} parent=5 // pred_check_branch
        %1694 = sbr.rel (%p1692) target = $region60
      $region59: #{tpu_custom_call.1} parent=5 // pred_region
        %s1695 = ssub.s32 %s17, 2
        // Predicated region
        $region61: #{tpu_custom_call.1} parent=59 // pred_check
          %p1696 = pneg %p198
        $region62: #{tpu_custom_call.1} parent=59 // pred_check_branch
          %1698 = sbr.rel (%p1696) target = $region64
        $region63: #{tpu_custom_call.1} parent=59 // pred_region
          %s1699 = sand.u32 %s183, 1
          %s1700 = scalar_lea.sflag [#allocation3], %s1699
          %s1701 = sand.u32 %s183, 1
          %s1702 = smul.addr %s1701, 16
          %s1703 = scalar_lea.vmem [#allocation5], %s1702
          %1704 = dma.done %s1700, 256
        $region64: #{tpu_custom_call.1} parent=59 // pred_fallthru
          _
      $region60: #{tpu_custom_call.1} parent=5 // pred_fallthru
        _
    $region6: #{tpu_custom_call.1} parent=1 // loop_footer
      %s21 = sadd.s32 1, %s17
    $region7: #{tpu_custom_call.1} parent=1 // loop_footer_branch
      %16 = sbr.rel target = $region3
    $region8: #{tpu_custom_call.1} parent=1 // loop_exit
      _
    %1705 = vsyncpa [#allocation3], 1
    %s1706 = scalar_lea.sflag [#allocation3], 1
    %1707 = vsyncpa %s1706, 1
    %1708 = vsyncpa [#allocation4], 1
    %s1709 = scalar_lea.sflag [#allocation4], 1
    %1710 = vsyncpa %s1709, 1

</llo_original>
